<compile_context>
chip_gen: v7x
topology: tpu7x:2x2x1
jax: 0.10.0
libtpu: 0.0.40
codegen_flags: <defaults>
</compile_context>

<pallas_src>
import numpy as np
import jax
import jax.numpy as jnp
from jax.experimental import pallas as pl
from jax.experimental.pallas import tpu as pltpu


# ----------------------------------------------------------------------------
# Fully fused Group forward kernel (all GroupConv blocks in one pallas_call)
# ----------------------------------------------------------------------------
def _make_fused_group_kernel(metas, out_slots, num_weight_refs, compute_dtype):
    """metas: static per-block info; out_slots: {block_idx: output slot}."""

    def conv_same(act_c, w_stack, masks, c1, k, pad, W):
        # act_c: (Cc, M) compute dtype; w_stack: (k*k*c1, Cc); masks: (k*k, M).
        # One MXU matmul produces every tap's channel mix; taps are aligned
        # with static lane shifts and border-masked (== zero padding).
        z = jnp.dot(w_stack, act_c, preferred_element_type=jnp.float32)
        acc = None
        for dy in range(k):
            for dx in range(k):
                t = dy * k + dx
                oy, ox = dy - pad, dx - pad
                zt = z[t * c1:(t + 1) * c1, :]
                s = oy * W + ox
                if s != 0:
                    zt = jnp.roll(zt, -s, axis=1)        # zt[m] <- z_t[m + s]
                if oy != 0 or ox != 0:
                    zt = zt * masks[t:t + 1, :]
                acc = zt if acc is None else acc + zt
        return acc                                        # (c1, M) float32

    def kernel(*refs):
        x_ref = refs[0]
        w_refs = refs[1:1 + num_weight_refs]
        o_refs = refs[1 + num_weight_refs:]

        act = x_ref[0]                                    # (C0, H0*W0)
        wi = 0
        for bi, m in enumerate(metas):
            k, pad, W, c1 = m["ksize"], m["pad"], m["W"], m["c1"]
            if m["stride"] == 1:
                w1, b1, msk, w2y, w2r, b2 = (w_refs[wi + j][...] for j in range(6))
                wi += 6
                half = m["cin"] // 2
                right = act[:half, :]
                left = act[half:, :]
                y = conv_same(left, w1, msk, c1, k, pad, W)
                y = jnp.maximum(y + b1, 0.0).astype(compute_dtype)
                o = jnp.dot(w2y, y, preferred_element_type=jnp.float32)
                o = o + jnp.dot(w2r, right, preferred_element_type=jnp.float32)
                act = jnp.maximum(o + b2, 0.0).astype(compute_dtype)
            else:                                         # stride 2
                w1, b1, msk, ssel, w2, b2 = (w_refs[wi + j][...] for j in range(6))
                wi += 6
                y = conv_same(act, w1, msk, c1, k, pad, W)
                # Subsample the full-resolution conv with a 0/1 selection
                # matmul (valid because padding == k // 2).
                y = jnp.dot(y.astype(compute_dtype), ssel,
                            preferred_element_type=jnp.float32)
                y = jnp.maximum(y + b1, 0.0).astype(compute_dtype)
                o = jnp.dot(w2, y, preferred_element_type=jnp.float32)
                act = jnp.maximum(o + b2, 0.0).astype(compute_dtype)
            if bi in out_slots:
                o_ref = o_refs[out_slots[bi]]
                o_ref[0] = act.astype(o_ref.dtype)

    return kernel


def _border_masks(H, W, k, pad):
    """(k*k, H*W) float mask: 1 where tap (dy, dx) reads an in-bounds input."""
    KK = k * k
    m = np.ones((KK, H, W), np.float32)
    for dy in range(k):
        for dx in range(k):
            t = dy * k + dx
            oy, ox = dy - pad, dx - pad
            if oy > 0:
                m[t, H - oy:, :] = 0.0
            elif oy < 0:
                m[t, :-oy, :] = 0.0
            if ox > 0:
                m[t, :, W - ox:] = 0.0
            elif ox < 0:
                m[t, :, :-ox] = 0.0
    return m.reshape(KK, H * W)


def _subsample_matrix(H, W, Ho, Wo):
    """0/1 matrix selecting the stride-2 centres from the full-res conv."""
    S = np.zeros((H * W, Ho * Wo), np.float32)
    for ho in range(Ho):
        for wo in range(Wo):
            S[(2 * ho) * W + 2 * wo, ho * Wo + wo] = 1.0
    return S


def group_forward(x_nchw, blocks, out_ids, compute_dtype=jnp.bfloat16):
    """Group.forward: base is the identity (empty nn.Sequential).
    x_nchw: (N, C, H, W).  Returns NCHW output(s) of the blocks in out_ids."""
    N, C0, H0, W0 = x_nchw.shape
    x = x_nchw.reshape(N, C0, H0 * W0).astype(compute_dtype)

    out_list = sorted({int(i) for i in out_ids})
    out_slots = {b: s for s, b in enumerate(out_list)}

    metas, operands = [], []
    out_shapes, out_specs, out_dims = [], [], []

    Hc, Wc, Cc = H0, W0, C0
    flops = 0
    for bi, p in enumerate(blocks):
        k, pad, stride = p["ksize"], p["padding"], p["stride"]
        c1, c2 = p["c1"], p["c2"]
        assert k % 2 == 1 and pad == k // 2, "GroupConv uses padding == k // 2"
        M = Hc * Wc
        masks = jnp.asarray(_border_masks(Hc, Wc, k, pad))
        metas.append(dict(stride=stride, ksize=k, pad=pad, W=Wc, cin=Cc, c1=c1))
        if stride == 1:
            operands += [p["w1"], p["b1"], masks, p["w2y"], p["w2r"], p["b2"]]
            flops += 2 * M * c1 * (k * k * (Cc // 2) + c2) \
                     + 2 * M * c2 * (Cc - Cc // 2)
        elif stride == 2:
            Ho = (Hc + 2 * pad - k) // 2 + 1
            Wo = (Wc + 2 * pad - k) // 2 + 1
            ssel = jnp.asarray(_subsample_matrix(Hc, Wc, Ho, Wo), compute_dtype)
            operands += [p["w1"], p["b1"], masks, ssel, p["w2"], p["b2"]]
            flops += 2 * M * c1 * (k * k * Cc + Ho * Wo) + 2 * Ho * Wo * c2 * c1
            Hc, Wc = Ho, Wo
        else:
            raise ValueError("GroupConv only supports stride 1 or 2")
        Cc = c2
        if bi in out_slots:
            out_shapes.append(jax.ShapeDtypeStruct((N, Cc, Hc * Wc), compute_dtype))
            out_specs.append(pl.BlockSpec((1, Cc, Hc * Wc), lambda n: (n, 0, 0)))
            out_dims.append((Cc, Hc, Wc))

    in_specs = [pl.BlockSpec((1, C0, H0 * W0), lambda n: (n, 0, 0))]
    in_specs += [pl.BlockSpec(w.shape, lambda n: (0, 0)) for w in operands]

    itemsize = jnp.dtype(compute_dtype).itemsize
    in_bytes = C0 * H0 * W0 * itemsize
    out_bytes = sum(c * h * w * itemsize for (c, h, w) in out_dims)
    wgt_bytes = sum(int(np.prod(w.shape)) * w.dtype.itemsize for w in operands)
    # 2x double-buffered activation/output blocks + weights + ~4 MiB headroom,
    # capped at 48 MiB so it always fits v7x's 64 MiB physical VMEM.
    vmem_limit = int(min(48 << 20,
                         max(8 << 20,
                             2 * (in_bytes + out_bytes) + 2 * wgt_bytes + (4 << 20))))

    cost = pl.CostEstimate(
        flops=int(N * flops), transcendentals=0,
        bytes_accessed=int(N * (in_bytes + out_bytes) + wgt_bytes))

    kernel = _make_fused_group_kernel(metas, out_slots, len(operands),
                                      compute_dtype)

    outs = pl.pallas_call(
        kernel,
        out_shape=tuple(out_shapes),
        grid=(N,),
        in_specs=in_specs,
        out_specs=tuple(out_specs),
        compiler_params=pltpu.CompilerParams(
            dimension_semantics=("parallel",),
            vmem_limit_bytes=vmem_limit),
        cost_estimate=cost,
    )(x, *operands)

    if not isinstance(outs, (tuple, list)):
        outs = (outs,)
    outs = tuple(o.reshape(N, c, h, w) for o, (c, h, w) in zip(outs, out_dims))
    return outs[0] if len(outs) == 1 else outs


# ----------------------------------------------------------------------------
# Parameter construction (mirrors Group.build / init_weights) and offline prep
# ----------------------------------------------------------------------------
def _init_conv(key, cout, cin_pg, k):
    fan_in = cin_pg * k * k
    return (jax.random.normal(key, (cout, cin_pg, k, k), jnp.float32)
            * np.sqrt(2.0 / fan_in))


def _init_bn(key, c):
    k1, k2, k3, k4 = jax.random.split(key, 4)
    gamma = 1.0 + 0.1 * jax.random.normal(k1, (c,), jnp.float32)
    beta = 0.1 * jax.random.normal(k2, (c,), jnp.float32)
    mean = 0.1 * jax.random.normal(k3, (c,), jnp.float32)
    var = 0.9 + 0.2 * jax.nn.sigmoid(jax.random.normal(k4, (c,), jnp.float32))
    return gamma, beta, mean, var


def _fold_bn(gamma, beta, mean, var, eps=1e-5):
    scale = gamma / jnp.sqrt(var + eps)
    return scale, beta - mean * scale


def build_group_params(key, inchn, depth, strides, kernel_size, group):
    """Raw (PyTorch-layout) per-block parameters, mirroring Group.build()."""
    depth_num = sum(depth)
    ks = list(kernel_size) * depth_num if len(kernel_size) == 1 else list(kernel_size)
    gp = list(group) * depth_num if len(group) == 1 else list(group)
    blocks, k_idx = [], 0
    _out = inchn
    for i in range(len(depth)):
        for j in range(depth[i]):
            _in = _out
            key, k1, k2, k3, k4 = jax.random.split(key, 5)
            kk, gg = ks[k_idx], gp[k_idx]
            pad = kk // 2
            if j == 0 and strides[i] == 2:
                _out = _in * 2
                conv1 = _init_conv(k1, _out, _in // gg, kk)
                bn1 = _init_bn(k2, _out)
                conv2 = _init_conv(k3, _out, _out, 1)
                bn2 = _init_bn(k4, _out)
                stride = 2
            else:
                half = _in // 2
                conv1 = _init_conv(k1, half, half // gg, kk)
                bn1 = _init_bn(k2, half)
                conv2 = _init_conv(k3, _in, _in, 1)
                bn2 = _init_bn(k4, _in)
                stride = 1
            blocks.append(dict(stride=stride, ksize=kk, padding=pad, group=gg,
                               cin=_in, conv1_w=conv1, bn1=bn1,
                               conv2_w=conv2, bn2=bn2))
            k_idx += 1
    return blocks


def prepare_block_params(raw_blocks, dtype=jnp.bfloat16):
    """Fold inference-mode BN into the conv weights and build the stacked
    per-tap, group-block-diagonal matrices once (no per-call reshapes)."""
    prepped = []
    for p in raw_blocks:
        k, g, stride, Cin = p["ksize"], p["group"], p["stride"], p["cin"]
        KK = k * k
        s1, b1 = _fold_bn(*p["bn1"])
        s2, b2 = _fold_bn(*p["bn2"])
        s1, b1 = np.asarray(s1, np.float32), np.asarray(b1, np.float32)
        s2, b2 = np.asarray(s2, np.float32), np.asarray(b2, np.float32)

        w1 = np.asarray(p["conv1_w"], np.float32)               # (C1, cig, k, k)
        W2 = np.asarray(p["conv2_w"], np.float32)[:, :, 0, 0]   # (C2, C2in)
        C1, cig = w1.shape[0], w1.shape[1]
        C2 = W2.shape[0]
        cog = C1 // g
        cin_conv = Cin // 2 if stride == 1 else Cin

        # Stacked per-tap weight: row t*C1 + co holds tap (t//k, t%k) of
        # output channel co, laid over the conv's input channels with the
        # group structure as a block-diagonal (zeros elsewhere), BN-scaled.
        w1_stack = np.zeros((KK, C1, cin_conv), np.float32)
        for co in range(C1):
            gr = co // cog
            w1_stack[:, co, gr * cig:(gr + 1) * cig] = (
                np.transpose(w1[co], (1, 2, 0)).reshape(KK, cig).copy() * s1[co])
        w1_stack = w1_stack.reshape(KK * C1, cin_conv)

        out = dict(stride=stride, ksize=k, padding=p["padding"],
                   cin=Cin, c1=C1, c2=C2,
                   w1=jnp.asarray(w1_stack, dtype),
                   b1=jnp.asarray(b1.reshape(-1, 1), jnp.float32),
                   b2=jnp.asarray(b2.reshape(-1, 1), jnp.float32))
        W2s = W2 * s2[:, None]
        if stride == 2:
            out["w2"] = jnp.asarray(W2s, dtype)
        else:
            half = Cin // 2
            out["w2y"] = jnp.asarray(W2s[:, :half], dtype)      # acts on conv1 out
            out["w2r"] = jnp.asarray(W2s[:, half:], dtype)      # acts on 'right'
        prepped.append(out)
    return prepped


# ----------------------------------------------------------------------------
# Pure-JAX reference (lax.conv) for the correctness check
# ----------------------------------------------------------------------------
def _conv_ref(x_nhwc, w_ochw, stride, padding, groups):
    w_hwio = jnp.transpose(w_ochw, (2, 3, 1, 0))
    return jax.lax.conv_general_dilated(
        x_nhwc, w_hwio, window_strides=(stride, stride),
        padding=((padding, padding), (padding, padding)),
        dimension_numbers=("NHWC", "HWIO", "NHWC"),
        feature_group_count=groups)


def _block_ref(x, p):
    s1, b1 = _fold_bn(*p["bn1"])
    s2, b2 = _fold_bn(*p["bn2"])

    def cbr(z, w, s, b, st, pd, g):
        return jnp.maximum(_conv_ref(z, w, st, pd, g) * s + b, 0.0)

    if p["stride"] == 2:
        y = cbr(x, p["conv1_w"], s1, b1, 2, p["padding"], p["group"])
        return cbr(y, p["conv2_w"], s2, b2, 1, 0, 1)
    half = x.shape[-1] // 2
    right, left = x[..., :half], x[..., half:]
    y = cbr(left, p["conv1_w"], s1, b1, 1, p["padding"], p["group"])
    out = jnp.concatenate([y, right], axis=-1)
    return cbr(out, p["conv2_w"], s2, b2, 1, 0, 1)


def group_forward_ref(x_nchw, raw_blocks, out_ids):
    x = jnp.transpose(x_nchw, (0, 2, 3, 1))
    outs = []
    for i, p in enumerate(raw_blocks):
        x = _block_ref(x, p)
        if i in out_ids:
            outs.append(jnp.transpose(x, (0, 3, 1, 2)))
    return outs[0] if len(out_ids) == 1 else tuple(outs)


# ----------------------------------------------------------------------------
if __name__ == "__main__":
    from itertools import accumulate

    key = jax.random.PRNGKey(0)
    k_x, k_p, k_p2 = jax.random.split(key, 3)

    # Group(base=[], depth=[1,1], inchn=4, kernel_size=[3], group=[1],
    #       strides=(1,2), out_indices=(0,1))
    depth, strides, out_indices = [1, 1], (1, 2), (0, 1)
    inchn, kernel_size, group = 4, [3], [1]
    out_ids = [list(accumulate(depth))[z] - 1 for z in out_indices]

    # Input matches nn.Conv2d convention: NCHW.
    x = jax.random.normal(k_x, (2, 4, 16, 16), jnp.float32)

    def run_and_check(raw_blocks, compute_dtype, rtol, atol):
        blocks = prepare_block_params(raw_blocks, compute_dtype)
        fwd = jax.jit(lambda xx: group_forward(xx, blocks, out_ids, compute_dtype))
        outs = jax.block_until_ready(fwd(x))
        refs = jax.block_until_ready(group_forward_ref(x, raw_blocks, out_ids))
        outs = outs if isinstance(outs, tuple) else (outs,)
        refs = refs if isinstance(refs, tuple) else (refs,)
        for o, r in zip(outs, refs):
            assert o.shape == r.shape, (o.shape, r.shape)
            np.testing.assert_allclose(np.asarray(o, dtype=np.float32),
                                       np.asarray(r), rtol=rtol, atol=atol)

    raw = build_group_params(k_p, inchn, depth, strides, kernel_size, group)
    # float32 path: exact up to MXU rounding.
    run_and_check(raw, jnp.float32, 1e-4, 1e-4)
    # bfloat16 storage/matmul dtype (v5e/v6e/v7x fast path), f32 accumulation.
    run_and_check(raw, jnp.bfloat16, 1e-1, 1e-1)
    # grouped-conv config exercises the block-diagonal stacked-weight path.
    raw_g2 = build_group_params(k_p2, inchn, depth, strides, kernel_size, [2])
    run_and_check(raw_g2, jnp.float32, 1e-4, 1e-4)

    print("KERNEL_OK")
</pallas_src>

<mosaic_0001>
module attributes {stable_mosaic.version = 11 : i64} {
  func.func @kernel(%arg0: i32, %arg1: memref<1x4x256xf32, #tpu.memory_space<vmem>>, %arg2: memref<18x2xf32, #tpu.memory_space<vmem>>, %arg3: memref<2x1xf32, #tpu.memory_space<vmem>>, %arg4: memref<9x256xf32, #tpu.memory_space<vmem>>, %arg5: memref<4x2xf32, #tpu.memory_space<vmem>>, %arg6: memref<4x2xf32, #tpu.memory_space<vmem>>, %arg7: memref<4x1xf32, #tpu.memory_space<vmem>>, %arg8: memref<72x4xf32, #tpu.memory_space<vmem>>, %arg9: memref<8x1xf32, #tpu.memory_space<vmem>>, %arg10: memref<9x256xf32, #tpu.memory_space<vmem>>, %arg11: memref<256x64xf32, #tpu.memory_space<vmem>>, %arg12: memref<8x8xf32, #tpu.memory_space<vmem>>, %arg13: memref<8x1xf32, #tpu.memory_space<vmem>>, %arg14: memref<1x4x256xf32, #tpu.memory_space<vmem>>, %arg15: memref<1x8x64xf32, #tpu.memory_space<vmem>>) attributes {dimension_semantics = [#tpu.dimension_semantics<parallel>], iteration_bounds = array<i64: 2>, scalar_prefetch = 0 : i64, scratch_operands = 0 : i64, tpu.core_type = #tpu.core_type<tc>, window_params = [{transform_indices = @transform_0, window_bounds = array<i64: 1, 4, 256>}, {pipeline_mode = #tpu.pipeline_mode<synchronous>, transform_indices = @transform_1, window_bounds = array<i64: 18, 2>}, {pipeline_mode = #tpu.pipeline_mode<synchronous>, transform_indices = @transform_2, window_bounds = array<i64: 2, 1>}, {pipeline_mode = #tpu.pipeline_mode<synchronous>, transform_indices = @transform_3, window_bounds = array<i64: 9, 256>}, {pipeline_mode = #tpu.pipeline_mode<synchronous>, transform_indices = @transform_4, window_bounds = array<i64: 4, 2>}, {pipeline_mode = #tpu.pipeline_mode<synchronous>, transform_indices = @transform_5, window_bounds = array<i64: 4, 2>}, {pipeline_mode = #tpu.pipeline_mode<synchronous>, transform_indices = @transform_6, window_bounds = array<i64: 4, 1>}, {pipeline_mode = #tpu.pipeline_mode<synchronous>, transform_indices = @transform_7, window_bounds = array<i64: 72, 4>}, {pipeline_mode = #tpu.pipeline_mode<synchronous>, transform_indices = @transform_8, window_bounds = array<i64: 8, 1>}, {pipeline_mode = #tpu.pipeline_mode<synchronous>, transform_indices = @transform_9, window_bounds = array<i64: 9, 256>}, {pipeline_mode = #tpu.pipeline_mode<synchronous>, transform_indices = @transform_10, window_bounds = array<i64: 256, 64>}, {pipeline_mode = #tpu.pipeline_mode<synchronous>, transform_indices = @transform_11, window_bounds = array<i64: 8, 8>}, {pipeline_mode = #tpu.pipeline_mode<synchronous>, transform_indices = @transform_12, window_bounds = array<i64: 8, 1>}, {transform_indices = @transform_13, window_bounds = array<i64: 1, 4, 256>}, {transform_indices = @transform_14, window_bounds = array<i64: 1, 8, 64>}]} {
    %c0 = arith.constant 0 : index
    %c0_0 = arith.constant 0 : index
    %c0_1 = arith.constant 0 : index
    %0 = vector.load %arg1[%c0, %c0_0, %c0_1] : memref<1x4x256xf32, #tpu.memory_space<vmem>>, vector<1x4x256xf32>
    %1 = vector.shape_cast %0 : vector<1x4x256xf32> to vector<4x256xf32>
    %c0_2 = arith.constant 0 : index
    %c0_3 = arith.constant 0 : index
    %2 = vector.load %arg2[%c0_2, %c0_3] : memref<18x2xf32, #tpu.memory_space<vmem>>, vector<18x2xf32>
    %c0_4 = arith.constant 0 : index
    %c0_5 = arith.constant 0 : index
    %3 = vector.load %arg3[%c0_4, %c0_5] : memref<2x1xf32, #tpu.memory_space<vmem>>, vector<2x1xf32>
    %c0_6 = arith.constant 0 : index
    %c0_7 = arith.constant 0 : index
    %4 = vector.load %arg4[%c0_6, %c0_7] : memref<9x256xf32, #tpu.memory_space<vmem>>, vector<9x256xf32>
    %c0_8 = arith.constant 0 : index
    %c0_9 = arith.constant 0 : index
    %5 = vector.load %arg5[%c0_8, %c0_9] : memref<4x2xf32, #tpu.memory_space<vmem>>, vector<4x2xf32>
    %c0_10 = arith.constant 0 : index
    %c0_11 = arith.constant 0 : index
    %6 = vector.load %arg6[%c0_10, %c0_11] : memref<4x2xf32, #tpu.memory_space<vmem>>, vector<4x2xf32>
    %c0_12 = arith.constant 0 : index
    %c0_13 = arith.constant 0 : index
    %7 = vector.load %arg7[%c0_12, %c0_13] : memref<4x1xf32, #tpu.memory_space<vmem>>, vector<4x1xf32>
    %8 = vector.extract_strided_slice %1 {offsets = [0, 0], sizes = [2, 256], strides = [1, 1]} : vector<4x256xf32> to vector<2x256xf32>
    %9 = vector.extract_strided_slice %1 {offsets = [2, 0], sizes = [2, 256], strides = [1, 1]} : vector<4x256xf32> to vector<2x256xf32>
    %cst = arith.constant dense<0.000000e+00> : vector<18x256xf32>
    %10 = tpu.matmul %2, %9, %cst {dimension_numbers = #tpu.dot_dimension_numbers<[1], [0], [0], [1], [0, 0, 1, 1], [], []>} : vector<18x2xf32>, vector<2x256xf32>, vector<18x256xf32> -> vector<18x256xf32>
    %11 = vector.extract_strided_slice %10 {offsets = [0, 0], sizes = [2, 256], strides = [1, 1]} : vector<18x256xf32> to vector<2x256xf32>
    %12 = vector.extract_strided_slice %11 {offsets = [0, 239], sizes = [2, 17], strides = [1, 1]} : vector<2x256xf32> to vector<2x17xf32>
    %13 = vector.extract_strided_slice %11 {offsets = [0, 0], sizes = [2, 239], strides = [1, 1]} : vector<2x256xf32> to vector<2x239xf32>
    %14 = tpu.concatenate %12, %13 in 1 : vector<2x17xf32>, vector<2x239xf32> -> vector<2x256xf32>
    %15 = vector.extract_strided_slice %4 {offsets = [0, 0], sizes = [1, 256], strides = [1, 1]} : vector<9x256xf32> to vector<1x256xf32>
    %16 = vector.broadcast %15 : vector<1x256xf32> to vector<2x256xf32>
    %17 = arith.mulf %14, %16 : vector<2x256xf32>
    %18 = vector.extract_strided_slice %10 {offsets = [2, 0], sizes = [2, 256], strides = [1, 1]} : vector<18x256xf32> to vector<2x256xf32>
    %19 = vector.extract_strided_slice %18 {offsets = [0, 240], sizes = [2, 16], strides = [1, 1]} : vector<2x256xf32> to vector<2x16xf32>
    %20 = vector.extract_strided_slice %18 {offsets = [0, 0], sizes = [2, 240], strides = [1, 1]} : vector<2x256xf32> to vector<2x240xf32>
    %21 = tpu.concatenate %19, %20 in 1 : vector<2x16xf32>, vector<2x240xf32> -> vector<2x256xf32>
    %22 = vector.extract_strided_slice %4 {offsets = [1, 0], sizes = [1, 256], strides = [1, 1]} : vector<9x256xf32> to vector<1x256xf32>
    %23 = vector.broadcast %22 : vector<1x256xf32> to vector<2x256xf32>
    %24 = arith.mulf %21, %23 : vector<2x256xf32>
    %25 = arith.addf %17, %24 : vector<2x256xf32>
    %26 = vector.extract_strided_slice %10 {offsets = [4, 0], sizes = [2, 256], strides = [1, 1]} : vector<18x256xf32> to vector<2x256xf32>
    %27 = vector.extract_strided_slice %26 {offsets = [0, 241], sizes = [2, 15], strides = [1, 1]} : vector<2x256xf32> to vector<2x15xf32>
    %28 = vector.extract_strided_slice %26 {offsets = [0, 0], sizes = [2, 241], strides = [1, 1]} : vector<2x256xf32> to vector<2x241xf32>
    %29 = tpu.concatenate %27, %28 in 1 : vector<2x15xf32>, vector<2x241xf32> -> vector<2x256xf32>
    %30 = vector.extract_strided_slice %4 {offsets = [2, 0], sizes = [1, 256], strides = [1, 1]} : vector<9x256xf32> to vector<1x256xf32>
    %31 = vector.broadcast %30 : vector<1x256xf32> to vector<2x256xf32>
    %32 = arith.mulf %29, %31 : vector<2x256xf32>
    %33 = arith.addf %25, %32 : vector<2x256xf32>
    %34 = vector.extract_strided_slice %10 {offsets = [6, 0], sizes = [2, 256], strides = [1, 1]} : vector<18x256xf32> to vector<2x256xf32>
    %35 = vector.extract_strided_slice %34 {offsets = [0, 255], sizes = [2, 1], strides = [1, 1]} : vector<2x256xf32> to vector<2x1xf32>
    %36 = vector.extract_strided_slice %34 {offsets = [0, 0], sizes = [2, 255], strides = [1, 1]} : vector<2x256xf32> to vector<2x255xf32>
    %37 = tpu.concatenate %35, %36 in 1 : vector<2x1xf32>, vector<2x255xf32> -> vector<2x256xf32>
    %38 = vector.extract_strided_slice %4 {offsets = [3, 0], sizes = [1, 256], strides = [1, 1]} : vector<9x256xf32> to vector<1x256xf32>
    %39 = vector.broadcast %38 : vector<1x256xf32> to vector<2x256xf32>
    %40 = arith.mulf %37, %39 : vector<2x256xf32>
    %41 = arith.addf %33, %40 : vector<2x256xf32>
    %42 = vector.extract_strided_slice %10 {offsets = [8, 0], sizes = [2, 256], strides = [1, 1]} : vector<18x256xf32> to vector<2x256xf32>
    %43 = arith.addf %41, %42 : vector<2x256xf32>
    %44 = vector.extract_strided_slice %10 {offsets = [10, 0], sizes = [2, 256], strides = [1, 1]} : vector<18x256xf32> to vector<2x256xf32>
    %45 = vector.extract_strided_slice %44 {offsets = [0, 1], sizes = [2, 255], strides = [1, 1]} : vector<2x256xf32> to vector<2x255xf32>
    %46 = vector.extract_strided_slice %44 {offsets = [0, 0], sizes = [2, 1], strides = [1, 1]} : vector<2x256xf32> to vector<2x1xf32>
    %47 = tpu.concatenate %45, %46 in 1 : vector<2x255xf32>, vector<2x1xf32> -> vector<2x256xf32>
    %48 = vector.extract_strided_slice %4 {offsets = [5, 0], sizes = [1, 256], strides = [1, 1]} : vector<9x256xf32> to vector<1x256xf32>
    %49 = vector.broadcast %48 : vector<1x256xf32> to vector<2x256xf32>
    %50 = arith.mulf %47, %49 : vector<2x256xf32>
    %51 = arith.addf %43, %50 : vector<2x256xf32>
    %52 = vector.extract_strided_slice %10 {offsets = [12, 0], sizes = [2, 256], strides = [1, 1]} : vector<18x256xf32> to vector<2x256xf32>
    %53 = vector.extract_strided_slice %52 {offsets = [0, 15], sizes = [2, 241], strides = [1, 1]} : vector<2x256xf32> to vector<2x241xf32>
    %54 = vector.extract_strided_slice %52 {offsets = [0, 0], sizes = [2, 15], strides = [1, 1]} : vector<2x256xf32> to vector<2x15xf32>
    %55 = tpu.concatenate %53, %54 in 1 : vector<2x241xf32>, vector<2x15xf32> -> vector<2x256xf32>
    %56 = vector.extract_strided_slice %4 {offsets = [6, 0], sizes = [1, 256], strides = [1, 1]} : vector<9x256xf32> to vector<1x256xf32>
    %57 = vector.broadcast %56 : vector<1x256xf32> to vector<2x256xf32>
    %58 = arith.mulf %55, %57 : vector<2x256xf32>
    %59 = arith.addf %51, %58 : vector<2x256xf32>
    %60 = vector.extract_strided_slice %10 {offsets = [14, 0], sizes = [2, 256], strides = [1, 1]} : vector<18x256xf32> to vector<2x256xf32>
    %61 = vector.extract_strided_slice %60 {offsets = [0, 16], sizes = [2, 240], strides = [1, 1]} : vector<2x256xf32> to vector<2x240xf32>
    %62 = vector.extract_strided_slice %60 {offsets = [0, 0], sizes = [2, 16], strides = [1, 1]} : vector<2x256xf32> to vector<2x16xf32>
    %63 = tpu.concatenate %61, %62 in 1 : vector<2x240xf32>, vector<2x16xf32> -> vector<2x256xf32>
    %64 = vector.extract_strided_slice %4 {offsets = [7, 0], sizes = [1, 256], strides = [1, 1]} : vector<9x256xf32> to vector<1x256xf32>
    %65 = vector.broadcast %64 : vector<1x256xf32> to vector<2x256xf32>
    %66 = arith.mulf %63, %65 : vector<2x256xf32>
    %67 = arith.addf %59, %66 : vector<2x256xf32>
    %68 = vector.extract_strided_slice %10 {offsets = [16, 0], sizes = [2, 256], strides = [1, 1]} : vector<18x256xf32> to vector<2x256xf32>
    %69 = vector.extract_strided_slice %68 {offsets = [0, 17], sizes = [2, 239], strides = [1, 1]} : vector<2x256xf32> to vector<2x239xf32>
    %70 = vector.extract_strided_slice %68 {offsets = [0, 0], sizes = [2, 17], strides = [1, 1]} : vector<2x256xf32> to vector<2x17xf32>
    %71 = tpu.concatenate %69, %70 in 1 : vector<2x239xf32>, vector<2x17xf32> -> vector<2x256xf32>
    %72 = vector.extract_strided_slice %4 {offsets = [8, 0], sizes = [1, 256], strides = [1, 1]} : vector<9x256xf32> to vector<1x256xf32>
    %73 = vector.broadcast %72 : vector<1x256xf32> to vector<2x256xf32>
    %74 = arith.mulf %71, %73 : vector<2x256xf32>
    %75 = arith.addf %67, %74 : vector<2x256xf32>
    %76 = vector.broadcast %3 : vector<2x1xf32> to vector<2x256xf32>
    %77 = arith.addf %75, %76 : vector<2x256xf32>
    %cst_14 = arith.constant 0.000000e+00 : f32
    %78 = vector.broadcast %cst_14 : f32 to vector<2x256xf32>
    %79 = arith.maximumf %77, %78 : vector<2x256xf32>
    %cst_15 = arith.constant dense<0.000000e+00> : vector<4x256xf32>
    %80 = tpu.matmul %5, %79, %cst_15 {dimension_numbers = #tpu.dot_dimension_numbers<[1], [0], [0], [1], [0, 0, 1, 1], [], []>} : vector<4x2xf32>, vector<2x256xf32>, vector<4x256xf32> -> vector<4x256xf32>
    %cst_16 = arith.constant dense<0.000000e+00> : vector<4x256xf32>
    %81 = tpu.matmul %6, %8, %cst_16 {dimension_numbers = #tpu.dot_dimension_numbers<[1], [0], [0], [1], [0, 0, 1, 1], [], []>} : vector<4x2xf32>, vector<2x256xf32>, vector<4x256xf32> -> vector<4x256xf32>
    %82 = arith.addf %80, %81 : vector<4x256xf32>
    %83 = vector.broadcast %7 : vector<4x1xf32> to vector<4x256xf32>
    %84 = arith.addf %82, %83 : vector<4x256xf32>
    %cst_17 = arith.constant 0.000000e+00 : f32
    %85 = vector.broadcast %cst_17 : f32 to vector<4x256xf32>
    %86 = arith.maximumf %84, %85 : vector<4x256xf32>
    %c0_18 = arith.constant 0 : index
    %c0_19 = arith.constant 0 : index
    %c0_20 = arith.constant 0 : index
    %87 = vector.load %arg14[%c0_18, %c0_19, %c0_20] : memref<1x4x256xf32, #tpu.memory_space<vmem>>, vector<1x4x256xf32>
    %88 = vector.shape_cast %87 : vector<1x4x256xf32> to vector<4x256xf32>
    %89 = vector.shape_cast %86 : vector<4x256xf32> to vector<1x4x256xf32>
    tpu.vector_store %arg14[%c0_18, %c0_19, %c0_20], %89 {strides = array<i32>} : memref<1x4x256xf32, #tpu.memory_space<vmem>>, vector<1x4x256xf32>,
    %c0_21 = arith.constant 0 : index
    %c0_22 = arith.constant 0 : index
    %90 = vector.load %arg8[%c0_21, %c0_22] : memref<72x4xf32, #tpu.memory_space<vmem>>, vector<72x4xf32>
    %c0_23 = arith.constant 0 : index
    %c0_24 = arith.constant 0 : index
    %91 = vector.load %arg9[%c0_23, %c0_24] : memref<8x1xf32, #tpu.memory_space<vmem>>, vector<8x1xf32>
    %c0_25 = arith.constant 0 : index
    %c0_26 = arith.constant 0 : index
    %92 = vector.load %arg10[%c0_25, %c0_26] : memref<9x256xf32, #tpu.memory_space<vmem>>, vector<9x256xf32>
    %c0_27 = arith.constant 0 : index
    %c0_28 = arith.constant 0 : index
    %93 = vector.load %arg11[%c0_27, %c0_28] : memref<256x64xf32, #tpu.memory_space<vmem>>, vector<256x64xf32>
    %c0_29 = arith.constant 0 : index
    %c0_30 = arith.constant 0 : index
    %94 = vector.load %arg12[%c0_29, %c0_30] : memref<8x8xf32, #tpu.memory_space<vmem>>, vector<8x8xf32>
    %c0_31 = arith.constant 0 : index
    %c0_32 = arith.constant 0 : index
    %95 = vector.load %arg13[%c0_31, %c0_32] : memref<8x1xf32, #tpu.memory_space<vmem>>, vector<8x1xf32>
    %cst_33 = arith.constant dense<0.000000e+00> : vector<72x256xf32>
    %96 = tpu.matmul %90, %86, %cst_33 {dimension_numbers = #tpu.dot_dimension_numbers<[1], [0], [0], [1], [0, 0, 1, 1], [], []>} : vector<72x4xf32>, vector<4x256xf32>, vector<72x256xf32> -> vector<72x256xf32>
    %97 = vector.extract_strided_slice %96 {offsets = [0, 0], sizes = [8, 256], strides = [1, 1]} : vector<72x256xf32> to vector<8x256xf32>
    %98 = vector.extract_strided_slice %97 {offsets = [0, 239], sizes = [8, 17], strides = [1, 1]} : vector<8x256xf32> to vector<8x17xf32>
    %99 = vector.extract_strided_slice %97 {offsets = [0, 0], sizes = [8, 239], strides = [1, 1]} : vector<8x256xf32> to vector<8x239xf32>
    %100 = tpu.concatenate %98, %99 in 1 : vector<8x17xf32>, vector<8x239xf32> -> vector<8x256xf32>
    %101 = vector.extract_strided_slice %92 {offsets = [0, 0], sizes = [1, 256], strides = [1, 1]} : vector<9x256xf32> to vector<1x256xf32>
    %102 = vector.broadcast %101 : vector<1x256xf32> to vector<8x256xf32>
    %103 = arith.mulf %100, %102 : vector<8x256xf32>
    %104 = vector.extract_strided_slice %96 {offsets = [8, 0], sizes = [8, 256], strides = [1, 1]} : vector<72x256xf32> to vector<8x256xf32>
    %105 = vector.extract_strided_slice %104 {offsets = [0, 240], sizes = [8, 16], strides = [1, 1]} : vector<8x256xf32> to vector<8x16xf32>
    %106 = vector.extract_strided_slice %104 {offsets = [0, 0], sizes = [8, 240], strides = [1, 1]} : vector<8x256xf32> to vector<8x240xf32>
    %107 = tpu.concatenate %105, %106 in 1 : vector<8x16xf32>, vector<8x240xf32> -> vector<8x256xf32>
    %108 = vector.extract_strided_slice %92 {offsets = [1, 0], sizes = [1, 256], strides = [1, 1]} : vector<9x256xf32> to vector<1x256xf32>
    %109 = vector.broadcast %108 : vector<1x256xf32> to vector<8x256xf32>
    %110 = arith.mulf %107, %109 : vector<8x256xf32>
    %111 = arith.addf %103, %110 : vector<8x256xf32>
    %112 = vector.extract_strided_slice %96 {offsets = [16, 0], sizes = [8, 256], strides = [1, 1]} : vector<72x256xf32> to vector<8x256xf32>
    %113 = vector.extract_strided_slice %112 {offsets = [0, 241], sizes = [8, 15], strides = [1, 1]} : vector<8x256xf32> to vector<8x15xf32>
    %114 = vector.extract_strided_slice %112 {offsets = [0, 0], sizes = [8, 241], strides = [1, 1]} : vector<8x256xf32> to vector<8x241xf32>
    %115 = tpu.concatenate %113, %114 in 1 : vector<8x15xf32>, vector<8x241xf32> -> vector<8x256xf32>
    %116 = vector.extract_strided_slice %92 {offsets = [2, 0], sizes = [1, 256], strides = [1, 1]} : vector<9x256xf32> to vector<1x256xf32>
    %117 = vector.broadcast %116 : vector<1x256xf32> to vector<8x256xf32>
    %118 = arith.mulf %115, %117 : vector<8x256xf32>
    %119 = arith.addf %111, %118 : vector<8x256xf32>
    %120 = vector.extract_strided_slice %96 {offsets = [24, 0], sizes = [8, 256], strides = [1, 1]} : vector<72x256xf32> to vector<8x256xf32>
    %121 = vector.extract_strided_slice %120 {offsets = [0, 255], sizes = [8, 1], strides = [1, 1]} : vector<8x256xf32> to vector<8x1xf32>
    %122 = vector.extract_strided_slice %120 {offsets = [0, 0], sizes = [8, 255], strides = [1, 1]} : vector<8x256xf32> to vector<8x255xf32>
    %123 = tpu.concatenate %121, %122 in 1 : vector<8x1xf32>, vector<8x255xf32> -> vector<8x256xf32>
    %124 = vector.extract_strided_slice %92 {offsets = [3, 0], sizes = [1, 256], strides = [1, 1]} : vector<9x256xf32> to vector<1x256xf32>
    %125 = vector.broadcast %124 : vector<1x256xf32> to vector<8x256xf32>
    %126 = arith.mulf %123, %125 : vector<8x256xf32>
    %127 = arith.addf %119, %126 : vector<8x256xf32>
    %128 = vector.extract_strided_slice %96 {offsets = [32, 0], sizes = [8, 256], strides = [1, 1]} : vector<72x256xf32> to vector<8x256xf32>
    %129 = arith.addf %127, %128 : vector<8x256xf32>
    %130 = vector.extract_strided_slice %96 {offsets = [40, 0], sizes = [8, 256], strides = [1, 1]} : vector<72x256xf32> to vector<8x256xf32>
    %131 = vector.extract_strided_slice %130 {offsets = [0, 1], sizes = [8, 255], strides = [1, 1]} : vector<8x256xf32> to vector<8x255xf32>
    %132 = vector.extract_strided_slice %130 {offsets = [0, 0], sizes = [8, 1], strides = [1, 1]} : vector<8x256xf32> to vector<8x1xf32>
    %133 = tpu.concatenate %131, %132 in 1 : vector<8x255xf32>, vector<8x1xf32> -> vector<8x256xf32>
    %134 = vector.extract_strided_slice %92 {offsets = [5, 0], sizes = [1, 256], strides = [1, 1]} : vector<9x256xf32> to vector<1x256xf32>
    %135 = vector.broadcast %134 : vector<1x256xf32> to vector<8x256xf32>
    %136 = arith.mulf %133, %135 : vector<8x256xf32>
    %137 = arith.addf %129, %136 : vector<8x256xf32>
    %138 = vector.extract_strided_slice %96 {offsets = [48, 0], sizes = [8, 256], strides = [1, 1]} : vector<72x256xf32> to vector<8x256xf32>
    %139 = vector.extract_strided_slice %138 {offsets = [0, 15], sizes = [8, 241], strides = [1, 1]} : vector<8x256xf32> to vector<8x241xf32>
    %140 = vector.extract_strided_slice %138 {offsets = [0, 0], sizes = [8, 15], strides = [1, 1]} : vector<8x256xf32> to vector<8x15xf32>
    %141 = tpu.concatenate %139, %140 in 1 : vector<8x241xf32>, vector<8x15xf32> -> vector<8x256xf32>
    %142 = vector.extract_strided_slice %92 {offsets = [6, 0], sizes = [1, 256], strides = [1, 1]} : vector<9x256xf32> to vector<1x256xf32>
    %143 = vector.broadcast %142 : vector<1x256xf32> to vector<8x256xf32>
    %144 = arith.mulf %141, %143 : vector<8x256xf32>
    %145 = arith.addf %137, %144 : vector<8x256xf32>
    %146 = vector.extract_strided_slice %96 {offsets = [56, 0], sizes = [8, 256], strides = [1, 1]} : vector<72x256xf32> to vector<8x256xf32>
    %147 = vector.extract_strided_slice %146 {offsets = [0, 16], sizes = [8, 240], strides = [1, 1]} : vector<8x256xf32> to vector<8x240xf32>
    %148 = vector.extract_strided_slice %146 {offsets = [0, 0], sizes = [8, 16], strides = [1, 1]} : vector<8x256xf32> to vector<8x16xf32>
    %149 = tpu.concatenate %147, %148 in 1 : vector<8x240xf32>, vector<8x16xf32> -> vector<8x256xf32>
    %150 = vector.extract_strided_slice %92 {offsets = [7, 0], sizes = [1, 256], strides = [1, 1]} : vector<9x256xf32> to vector<1x256xf32>
    %151 = vector.broadcast %150 : vector<1x256xf32> to vector<8x256xf32>
    %152 = arith.mulf %149, %151 : vector<8x256xf32>
    %153 = arith.addf %145, %152 : vector<8x256xf32>
    %154 = vector.extract_strided_slice %96 {offsets = [64, 0], sizes = [8, 256], strides = [1, 1]} : vector<72x256xf32> to vector<8x256xf32>
    %155 = vector.extract_strided_slice %154 {offsets = [0, 17], sizes = [8, 239], strides = [1, 1]} : vector<8x256xf32> to vector<8x239xf32>
    %156 = vector.extract_strided_slice %154 {offsets = [0, 0], sizes = [8, 17], strides = [1, 1]} : vector<8x256xf32> to vector<8x17xf32>
    %157 = tpu.concatenate %155, %156 in 1 : vector<8x239xf32>, vector<8x17xf32> -> vector<8x256xf32>
    %158 = vector.extract_strided_slice %92 {offsets = [8, 0], sizes = [1, 256], strides = [1, 1]} : vector<9x256xf32> to vector<1x256xf32>
    %159 = vector.broadcast %158 : vector<1x256xf32> to vector<8x256xf32>
    %160 = arith.mulf %157, %159 : vector<8x256xf32>
    %161 = arith.addf %153, %160 : vector<8x256xf32>
    %cst_34 = arith.constant dense<0.000000e+00> : vector<8x64xf32>
    %162 = tpu.matmul %161, %93, %cst_34 {dimension_numbers = #tpu.dot_dimension_numbers<[1], [0], [0], [1], [0, 0, 1, 1], [], []>} : vector<8x256xf32>, vector<256x64xf32>, vector<8x64xf32> -> vector<8x64xf32>
    %163 = vector.broadcast %91 : vector<8x1xf32> to vector<8x64xf32>
    %164 = arith.addf %162, %163 : vector<8x64xf32>
    %cst_35 = arith.constant 0.000000e+00 : f32
    %165 = vector.broadcast %cst_35 : f32 to vector<8x64xf32>
    %166 = arith.maximumf %164, %165 : vector<8x64xf32>
    %cst_36 = arith.constant dense<0.000000e+00> : vector<8x64xf32>
    %167 = tpu.matmul %94, %166, %cst_36 {dimension_numbers = #tpu.dot_dimension_numbers<[1], [0], [0], [1], [0, 0, 1, 1], [], []>} : vector<8x8xf32>, vector<8x64xf32>, vector<8x64xf32> -> vector<8x64xf32>
    %168 = vector.broadcast %95 : vector<8x1xf32> to vector<8x64xf32>
    %169 = arith.addf %167, %168 : vector<8x64xf32>
    %cst_37 = arith.constant 0.000000e+00 : f32
    %170 = vector.broadcast %cst_37 : f32 to vector<8x64xf32>
    %171 = arith.maximumf %169, %170 : vector<8x64xf32>
    %c0_38 = arith.constant 0 : index
    %c0_39 = arith.constant 0 : index
    %c0_40 = arith.constant 0 : index
    %172 = vector.load %arg15[%c0_38, %c0_39, %c0_40] : memref<1x8x64xf32, #tpu.memory_space<vmem>>, vector<1x8x64xf32>
    %173 = vector.shape_cast %172 : vector<1x8x64xf32> to vector<8x64xf32>
    %174 = vector.shape_cast %171 : vector<8x64xf32> to vector<1x8x64xf32>
    tpu.vector_store %arg15[%c0_38, %c0_39, %c0_40], %174 {strides = array<i32>} : memref<1x8x64xf32, #tpu.memory_space<vmem>>, vector<1x8x64xf32>,
    return
  }
  func.func @transform_0(%arg0: i32) -> (i32, i32, i32) {
    %c0_i32 = arith.constant 0 : i32
    %c0_i32_0 = arith.constant 0 : i32
    %c0_i32_1 = arith.constant 0 : i32
    return %arg0, %c0_i32, %c0_i32_0 : i32, i32, i32
  }
  func.func @transform_1(%arg0: i32) -> (i32, i32) {
    %c0_i32 = arith.constant 0 : i32
    %c0_i32_0 = arith.constant 0 : i32
    %c0_i32_1 = arith.constant 0 : i32
    return %c0_i32, %c0_i32_0 : i32, i32
  }
  func.func @transform_2(%arg0: i32) -> (i32, i32) {
    %c0_i32 = arith.constant 0 : i32
    %c0_i32_0 = arith.constant 0 : i32
    %c0_i32_1 = arith.constant 0 : i32
    return %c0_i32, %c0_i32_0 : i32, i32
  }
  func.func @transform_3(%arg0: i32) -> (i32, i32) {
    %c0_i32 = arith.constant 0 : i32
    %c0_i32_0 = arith.constant 0 : i32
    %c0_i32_1 = arith.constant 0 : i32
    return %c0_i32, %c0_i32_0 : i32, i32
  }
  func.func @transform_4(%arg0: i32) -> (i32, i32) {
    %c0_i32 = arith.constant 0 : i32
    %c0_i32_0 = arith.constant 0 : i32
    %c0_i32_1 = arith.constant 0 : i32
    return %c0_i32, %c0_i32_0 : i32, i32
  }
  func.func @transform_5(%arg0: i32) -> (i32, i32) {
    %c0_i32 = arith.constant 0 : i32
    %c0_i32_0 = arith.constant 0 : i32
    %c0_i32_1 = arith.constant 0 : i32
    return %c0_i32, %c0_i32_0 : i32, i32
  }
  func.func @transform_6(%arg0: i32) -> (i32, i32) {
    %c0_i32 = arith.constant 0 : i32
    %c0_i32_0 = arith.constant 0 : i32
    %c0_i32_1 = arith.constant 0 : i32
    return %c0_i32, %c0_i32_0 : i32, i32
  }
  func.func @transform_7(%arg0: i32) -> (i32, i32) {
    %c0_i32 = arith.constant 0 : i32
    %c0_i32_0 = arith.constant 0 : i32
    %c0_i32_1 = arith.constant 0 : i32
    return %c0_i32, %c0_i32_0 : i32, i32
  }
  func.func @transform_8(%arg0: i32) -> (i32, i32) {
    %c0_i32 = arith.constant 0 : i32
    %c0_i32_0 = arith.constant 0 : i32
    %c0_i32_1 = arith.constant 0 : i32
    return %c0_i32, %c0_i32_0 : i32, i32
  }
  func.func @transform_9(%arg0: i32) -> (i32, i32) {
    %c0_i32 = arith.constant 0 : i32
    %c0_i32_0 = arith.constant 0 : i32
    %c0_i32_1 = arith.constant 0 : i32
    return %c0_i32, %c0_i32_0 : i32, i32
  }
  func.func @transform_10(%arg0: i32) -> (i32, i32) {
    %c0_i32 = arith.constant 0 : i32
    %c0_i32_0 = arith.constant 0 : i32
    %c0_i32_1 = arith.constant 0 : i32
    return %c0_i32, %c0_i32_0 : i32, i32
  }
  func.func @transform_11(%arg0: i32) -> (i32, i32) {
    %c0_i32 = arith.constant 0 : i32
    %c0_i32_0 = arith.constant 0 : i32
    %c0_i32_1 = arith.constant 0 : i32
    return %c0_i32, %c0_i32_0 : i32, i32
  }
  func.func @transform_12(%arg0: i32) -> (i32, i32) {
    %c0_i32 = arith.constant 0 : i32
    %c0_i32_0 = arith.constant 0 : i32
    %c0_i32_1 = arith.constant 0 : i32
    return %c0_i32, %c0_i32_0 : i32, i32
  }
  func.func @transform_13(%arg0: i32) -> (i32, i32, i32) {
    %c0_i32 = arith.constant 0 : i32
    %c0_i32_0 = arith.constant 0 : i32
    %c0_i32_1 = arith.constant 0 : i32
    return %arg0, %c0_i32, %c0_i32_0 : i32, i32, i32
  }
  func.func @transform_14(%arg0: i32) -> (i32, i32, i32) {
    %c0_i32 = arith.constant 0 : i32
    %c0_i32_0 = arith.constant 0 : i32
    %c0_i32_1 = arith.constant 0 : i32
    return %arg0, %c0_i32, %c0_i32_0 : i32, i32, i32
  }
}

</mosaic_0001>

<llo_original>
// kernel: _lambda_.1
$region0: #{_lambda_.1}
  #allocation0 [shape = 'u32[]', space=smem, size = 0x4, offset = 0x4, fixed_abs, tag = 'smem constant byte address 0x4 - core index']
  #allocation1 [shape = 'u32[144,128]{1,0:T(1,128)}', space=vmem, size = 0x12000, scoped, tag = 'internal scratch']
  %s0 = inlined_call_operand.vmem [shape: f32[2,4,256], index: 0, kind: input, shape index: {}]
  %s1 = inlined_call_operand.vmem [shape: f32[18,2], index: 1, kind: input, shape index: {}]
  %s2 = inlined_call_operand.vmem [shape: f32[2,1], index: 2, kind: input, shape index: {}]
  %s3 = inlined_call_operand.vmem [shape: f32[9,256], index: 3, kind: input, shape index: {}, may-alias: {3,9}]
  %s4 = inlined_call_operand.hbm [shape: f32[4,2], index: 4, kind: input, shape index: {}]
  %s5 = inlined_call_operand.vmem [shape: f32[4,2], index: 5, kind: input, shape index: {}]
  %s6 = inlined_call_operand.vmem [shape: f32[4,1], index: 6, kind: input, shape index: {}]
  %s7 = inlined_call_operand.vmem [shape: f32[72,4], index: 7, kind: input, shape index: {}]
  %s8 = inlined_call_operand.vmem [shape: f32[8,1], index: 8, kind: input, shape index: {}]
  %s9 = inlined_call_operand.vmem [shape: f32[9,256], index: 9, kind: input, shape index: {}, may-alias: {3,9}]
  %s10 = inlined_call_operand.hbm [shape: f32[256,64], index: 10, kind: input, shape index: {}]
  %s11 = inlined_call_operand.vmem [shape: f32[8,8], index: 11, kind: input, shape index: {}]
  %s12 = inlined_call_operand.vmem [shape: f32[8,1], index: 12, kind: input, shape index: {}]
  %s13 = inlined_call_operand.vmem [shape: f32[2,4,256], index: 13, kind: output, shape index: {0}]
  %s14 = inlined_call_operand.vmem [shape: f32[2,8,64], index: 14, kind: output, shape index: {1}]
  %15 = xla_tuple %s13, %s14
  %s16 = sld [smem:[#allocation0]]
  $region101: #{_lambda_.1} parent=0
    _
  %s18 = ssub.s32 1, %s16
  %s19 = scalar_select 0, %s18, %s16
  $region1: #{_lambda_.1} parent=0
    #allocation2 [shape = 'u8[2048]{0}', space=vmem, size = 0x800, scoped, tag = 'input window, operand 4, single buffered']
    #allocation3 [shape = 's32[2]{0}', space=sflag, size = 0x8, scoped, tag = 'scoped memory for _lambda_.1']
    #allocation4 [shape = 'u8[131072]{0}', space=vmem, size = 0x20000, scoped, tag = 'input window, operand 10, single buffered']
    #allocation5 [shape = 's32[1]{0}', space=sflag, size = 0x4, scoped, tag = 'scoped memory for _lambda_.1']
    %20 = vsyncpa [#allocation3], 0
    %21 = vsyncpa [#allocation5], 0
    loop: start=0, step=1, limit=4
    $region2: #{_lambda_.1} parent=1 // loop_pre_header
      _
    $region3: #{_lambda_.1} parent=1 // loop_header
      %s23 = sphi 0, %s27
      %p24 = scmp.ge.s32.totalorder %s23, 4
      %s33 = sphi 0, %s35
      %s36 = sphi 0, %s33
      %s37 = sphi 0, %s36
      %s53 = sphi 0, %s37
      %s57 = sphi 0, %s57
      %s59 = sphi 0, %s57
      %s60 = sphi 0, %s59
      %s74 = sphi 0, %s60
      %s78 = sphi 0, %s78
      %s80 = sphi 0, %s78
      %s81 = sphi 0, %s80
      %s95 = sphi 0, %s81
      %s99 = sphi 0, %s99
      %s101 = sphi 0, %s99
      %s102 = sphi 0, %s101
      %s116 = sphi 0, %s102
      %s120 = sphi 0, %s120
      %s122 = sphi 0, %s120
      %s123 = sphi 0, %s122
      %s137 = sphi 0, %s123
      %s141 = sphi 0, %s141
      %s143 = sphi 0, %s141
      %s144 = sphi 0, %s143
      %s158 = sphi 0, %s144
      %s162 = sphi 0, %s162
      %s164 = sphi 0, %s162
      %s165 = sphi 0, %s164
      %s179 = sphi 0, %s165
      %s183 = sphi 0, %s183
      %s185 = sphi 0, %s183
      %s186 = sphi 0, %s185
      %s200 = sphi 0, %s186
      %s204 = sphi 0, %s204
      %s206 = sphi 0, %s204
      %s207 = sphi 0, %s206
      %s221 = sphi 0, %s207
      %s225 = sphi 0, %s225
      %s227 = sphi 0, %s225
      %s228 = sphi 0, %s227
      %s242 = sphi 0, %s228
      %s246 = sphi 0, %s246
      %s248 = sphi 0, %s246
      %s249 = sphi 0, %s248
      %s263 = sphi 0, %s249
      %s267 = sphi 0, %s267
      %s269 = sphi 0, %s267
      %s270 = sphi 0, %s269
      %s284 = sphi 0, %s270
      %s288 = sphi 0, %s288
      %s290 = sphi 0, %s288
      %s291 = sphi 0, %s290
      %s305 = sphi 0, %s291
      %s311 = sphi 0, %s313
      %s314 = sphi 0, %s311
      %s315 = sphi 0, %s314
      %s331 = sphi 0, %s315
      %s337 = sphi 0, %s339
      %s340 = sphi 0, %s337
      %s341 = sphi 0, %s340
      %s357 = sphi 0, %s341
    $region4: #{_lambda_.1} parent=1 // loop_header_branch
      %26 = sbr.rel (%p24) target = $region8
    $region5: #{_lambda_.1} parent=1 // loop_body
      %s28 = ssub.s32 %s23, 1
      %s29 = ssub.s32 %s23, 2
      %s30 = sadd.s32 %s23, 1
      %s31 = ssub.s32 %s23, %s30
      %p32 = scmp.eq.s32.totalorder %s31, 0
      %s34 = sadd.s32 %s33, 1
      %s35 = scalar_select %p32, %s33, %s34
      %p38 = pneg %p32
      %p39 = scmp.eq.s32.totalorder %s23, 1
      %p40 = por %p38, %p39
      %p41 = scmp.ne.s32.totalorder %s33, %s36
      %p42 = scmp.eq.s32.totalorder %s23, 0
      %p43 = por %p41, %p42
      %p44 = scmp.ne.s32.totalorder %s33, %s36
      %p45 = scmp.eq.s32.totalorder %s28, 1
      %p46 = por %p44, %p45
      %p47 = scmp.ne.s32.totalorder %s36, %s37
      %p48 = scmp.eq.s32.totalorder %s28, 0
      %p49 = por %p47, %p48
      %p50 = scmp.ne.s32.totalorder %s36, %s37
      %p51 = scmp.eq.s32.totalorder %s29, 1
      %p52 = por %p50, %p51
      %p54 = scmp.ne.s32.totalorder %s37, %s53
      %p55 = scmp.eq.s32.totalorder %s29, 0
      %p56 = por %p54, %p55
      %s58 = sadd.s32 %s57, 1
      %p61 = scmp.eq.s32.totalorder %s23, 1
      %p62 = scmp.ne.s32.totalorder %s57, %s59
      %p63 = scmp.eq.s32.totalorder %s23, 0
      %p64 = por %p62, %p63
      %p65 = scmp.ne.s32.totalorder %s57, %s59
      %p66 = scmp.eq.s32.totalorder %s28, 1
      %p67 = por %p65, %p66
      %p68 = scmp.ne.s32.totalorder %s59, %s60
      %p69 = scmp.eq.s32.totalorder %s28, 0
      %p70 = por %p68, %p69
      %p71 = scmp.ne.s32.totalorder %s59, %s60
      %p72 = scmp.eq.s32.totalorder %s29, 1
      %p73 = por %p71, %p72
      %p75 = scmp.ne.s32.totalorder %s60, %s74
      %p76 = scmp.eq.s32.totalorder %s29, 0
      %p77 = por %p75, %p76
      %s79 = sadd.s32 %s78, 1
      %p82 = scmp.eq.s32.totalorder %s23, 1
      %p83 = scmp.ne.s32.totalorder %s78, %s80
      %p84 = scmp.eq.s32.totalorder %s23, 0
      %p85 = por %p83, %p84
      %p86 = scmp.ne.s32.totalorder %s78, %s80
      %p87 = scmp.eq.s32.totalorder %s28, 1
      %p88 = por %p86, %p87
      %p89 = scmp.ne.s32.totalorder %s80, %s81
      %p90 = scmp.eq.s32.totalorder %s28, 0
      %p91 = por %p89, %p90
      %p92 = scmp.ne.s32.totalorder %s80, %s81
      %p93 = scmp.eq.s32.totalorder %s29, 1
      %p94 = por %p92, %p93
      %p96 = scmp.ne.s32.totalorder %s81, %s95
      %p97 = scmp.eq.s32.totalorder %s29, 0
      %p98 = por %p96, %p97
      %s100 = sadd.s32 %s99, 1
      %p103 = scmp.eq.s32.totalorder %s23, 1
      %p104 = scmp.ne.s32.totalorder %s99, %s101
      %p105 = scmp.eq.s32.totalorder %s23, 0
      %p106 = por %p104, %p105
      %p107 = scmp.ne.s32.totalorder %s99, %s101
      %p108 = scmp.eq.s32.totalorder %s28, 1
      %p109 = por %p107, %p108
      %p110 = scmp.ne.s32.totalorder %s101, %s102
      %p111 = scmp.eq.s32.totalorder %s28, 0
      %p112 = por %p110, %p111
      %p113 = scmp.ne.s32.totalorder %s101, %s102
      %p114 = scmp.eq.s32.totalorder %s29, 1
      %p115 = por %p113, %p114
      %p117 = scmp.ne.s32.totalorder %s102, %s116
      %p118 = scmp.eq.s32.totalorder %s29, 0
      %p119 = por %p117, %p118
      %s121 = sadd.s32 %s120, 1
      %p124 = scmp.eq.s32.totalorder %s23, 1
      %p125 = scmp.ne.s32.totalorder %s120, %s122
      %p126 = scmp.eq.s32.totalorder %s23, 0
      %p127 = por %p125, %p126
      %p128 = scmp.ne.s32.totalorder %s120, %s122
      %p129 = scmp.eq.s32.totalorder %s28, 1
      %p130 = por %p128, %p129
      %p131 = scmp.ne.s32.totalorder %s122, %s123
      %p132 = scmp.eq.s32.totalorder %s28, 0
      %p133 = por %p131, %p132
      %p134 = scmp.ne.s32.totalorder %s122, %s123
      %p135 = scmp.eq.s32.totalorder %s29, 1
      %p136 = por %p134, %p135
      %p138 = scmp.ne.s32.totalorder %s123, %s137
      %p139 = scmp.eq.s32.totalorder %s29, 0
      %p140 = por %p138, %p139
      %s142 = sadd.s32 %s141, 1
      %p145 = scmp.eq.s32.totalorder %s23, 1
      %p146 = scmp.ne.s32.totalorder %s141, %s143
      %p147 = scmp.eq.s32.totalorder %s23, 0
      %p148 = por %p146, %p147
      %p149 = scmp.ne.s32.totalorder %s141, %s143
      %p150 = scmp.eq.s32.totalorder %s28, 1
      %p151 = por %p149, %p150
      %p152 = scmp.ne.s32.totalorder %s143, %s144
      %p153 = scmp.eq.s32.totalorder %s28, 0
      %p154 = por %p152, %p153
      %p155 = scmp.ne.s32.totalorder %s143, %s144
      %p156 = scmp.eq.s32.totalorder %s29, 1
      %p157 = por %p155, %p156
      %p159 = scmp.ne.s32.totalorder %s144, %s158
      %p160 = scmp.eq.s32.totalorder %s29, 0
      %p161 = por %p159, %p160
      %s163 = sadd.s32 %s162, 1
      %p166 = scmp.eq.s32.totalorder %s23, 1
      %p167 = scmp.ne.s32.totalorder %s162, %s164
      %p168 = scmp.eq.s32.totalorder %s23, 0
      %p169 = por %p167, %p168
      %p170 = scmp.ne.s32.totalorder %s162, %s164
      %p171 = scmp.eq.s32.totalorder %s28, 1
      %p172 = por %p170, %p171
      %p173 = scmp.ne.s32.totalorder %s164, %s165
      %p174 = scmp.eq.s32.totalorder %s28, 0
      %p175 = por %p173, %p174
      %p176 = scmp.ne.s32.totalorder %s164, %s165
      %p177 = scmp.eq.s32.totalorder %s29, 1
      %p178 = por %p176, %p177
      %p180 = scmp.ne.s32.totalorder %s165, %s179
      %p181 = scmp.eq.s32.totalorder %s29, 0
      %p182 = por %p180, %p181
      %s184 = sadd.s32 %s183, 1
      %p187 = scmp.eq.s32.totalorder %s23, 1
      %p188 = scmp.ne.s32.totalorder %s183, %s185
      %p189 = scmp.eq.s32.totalorder %s23, 0
      %p190 = por %p188, %p189
      %p191 = scmp.ne.s32.totalorder %s183, %s185
      %p192 = scmp.eq.s32.totalorder %s28, 1
      %p193 = por %p191, %p192
      %p194 = scmp.ne.s32.totalorder %s185, %s186
      %p195 = scmp.eq.s32.totalorder %s28, 0
      %p196 = por %p194, %p195
      %p197 = scmp.ne.s32.totalorder %s185, %s186
      %p198 = scmp.eq.s32.totalorder %s29, 1
      %p199 = por %p197, %p198
      %p201 = scmp.ne.s32.totalorder %s186, %s200
      %p202 = scmp.eq.s32.totalorder %s29, 0
      %p203 = por %p201, %p202
      %s205 = sadd.s32 %s204, 1
      %p208 = scmp.eq.s32.totalorder %s23, 1
      %p209 = scmp.ne.s32.totalorder %s204, %s206
      %p210 = scmp.eq.s32.totalorder %s23, 0
      %p211 = por %p209, %p210
      %p212 = scmp.ne.s32.totalorder %s204, %s206
      %p213 = scmp.eq.s32.totalorder %s28, 1
      %p214 = por %p212, %p213
      %p215 = scmp.ne.s32.totalorder %s206, %s207
      %p216 = scmp.eq.s32.totalorder %s28, 0
      %p217 = por %p215, %p216
      %p218 = scmp.ne.s32.totalorder %s206, %s207
      %p219 = scmp.eq.s32.totalorder %s29, 1
      %p220 = por %p218, %p219
      %p222 = scmp.ne.s32.totalorder %s207, %s221
      %p223 = scmp.eq.s32.totalorder %s29, 0
      %p224 = por %p222, %p223
      %s226 = sadd.s32 %s225, 1
      %p229 = scmp.eq.s32.totalorder %s23, 1
      %p230 = scmp.ne.s32.totalorder %s225, %s227
      %p231 = scmp.eq.s32.totalorder %s23, 0
      %p232 = por %p230, %p231
      %p233 = scmp.ne.s32.totalorder %s225, %s227
      %p234 = scmp.eq.s32.totalorder %s28, 1
      %p235 = por %p233, %p234
      %p236 = scmp.ne.s32.totalorder %s227, %s228
      %p237 = scmp.eq.s32.totalorder %s28, 0
      %p238 = por %p236, %p237
      %p239 = scmp.ne.s32.totalorder %s227, %s228
      %p240 = scmp.eq.s32.totalorder %s29, 1
      %p241 = por %p239, %p240
      %p243 = scmp.ne.s32.totalorder %s228, %s242
      %p244 = scmp.eq.s32.totalorder %s29, 0
      %p245 = por %p243, %p244
      %s247 = sadd.s32 %s246, 1
      %p250 = scmp.eq.s32.totalorder %s23, 1
      %p251 = scmp.ne.s32.totalorder %s246, %s248
      %p252 = scmp.eq.s32.totalorder %s23, 0
      %p253 = por %p251, %p252
      %p254 = scmp.ne.s32.totalorder %s246, %s248
      %p255 = scmp.eq.s32.totalorder %s28, 1
      %p256 = por %p254, %p255
      %p257 = scmp.ne.s32.totalorder %s248, %s249
      %p258 = scmp.eq.s32.totalorder %s28, 0
      %p259 = por %p257, %p258
      %p260 = scmp.ne.s32.totalorder %s248, %s249
      %p261 = scmp.eq.s32.totalorder %s29, 1
      %p262 = por %p260, %p261
      %p264 = scmp.ne.s32.totalorder %s249, %s263
      %p265 = scmp.eq.s32.totalorder %s29, 0
      %p266 = por %p264, %p265
      %s268 = sadd.s32 %s267, 1
      %p271 = scmp.eq.s32.totalorder %s23, 1
      %p272 = scmp.ne.s32.totalorder %s267, %s269
      %p273 = scmp.eq.s32.totalorder %s23, 0
      %p274 = por %p272, %p273
      %p275 = scmp.ne.s32.totalorder %s267, %s269
      %p276 = scmp.eq.s32.totalorder %s28, 1
      %p277 = por %p275, %p276
      %p278 = scmp.ne.s32.totalorder %s269, %s270
      %p279 = scmp.eq.s32.totalorder %s28, 0
      %p280 = por %p278, %p279
      %p281 = scmp.ne.s32.totalorder %s269, %s270
      %p282 = scmp.eq.s32.totalorder %s29, 1
      %p283 = por %p281, %p282
      %p285 = scmp.ne.s32.totalorder %s270, %s284
      %p286 = scmp.eq.s32.totalorder %s29, 0
      %p287 = por %p285, %p286
      %s289 = sadd.s32 %s288, 1
      %p292 = scmp.eq.s32.totalorder %s23, 1
      %p293 = scmp.ne.s32.totalorder %s288, %s290
      %p294 = scmp.eq.s32.totalorder %s23, 0
      %p295 = por %p293, %p294
      %p296 = scmp.ne.s32.totalorder %s288, %s290
      %p297 = scmp.eq.s32.totalorder %s28, 1
      %p298 = por %p296, %p297
      %p299 = scmp.ne.s32.totalorder %s290, %s291
      %p300 = scmp.eq.s32.totalorder %s28, 0
      %p301 = por %p299, %p300
      %p302 = scmp.ne.s32.totalorder %s290, %s291
      %p303 = scmp.eq.s32.totalorder %s29, 1
      %p304 = por %p302, %p303
      %p306 = scmp.ne.s32.totalorder %s291, %s305
      %p307 = scmp.eq.s32.totalorder %s29, 0
      %p308 = por %p306, %p307
      %s309 = ssub.s32 %s23, %s30
      %p310 = scmp.eq.s32.totalorder %s309, 0
      %s312 = sadd.s32 %s311, 1
      %s313 = scalar_select %p310, %s311, %s312
      %p316 = pneg %p310
      %p317 = scmp.eq.s32.totalorder %s23, 1
      %p318 = por %p316, %p317
      %p319 = scmp.ne.s32.totalorder %s311, %s314
      %p320 = scmp.eq.s32.totalorder %s23, 0
      %p321 = por %p319, %p320
      %p322 = scmp.ne.s32.totalorder %s311, %s314
      %p323 = scmp.eq.s32.totalorder %s28, 1
      %p324 = por %p322, %p323
      %p325 = scmp.ne.s32.totalorder %s314, %s315
      %p326 = scmp.eq.s32.totalorder %s28, 0
      %p327 = por %p325, %p326
      %p328 = scmp.ne.s32.totalorder %s314, %s315
      %p329 = scmp.eq.s32.totalorder %s29, 1
      %p330 = por %p328, %p329
      %p332 = scmp.ne.s32.totalorder %s315, %s331
      %p333 = scmp.eq.s32.totalorder %s29, 0
      %p334 = por %p332, %p333
      %s335 = ssub.s32 %s23, %s30
      %p336 = scmp.eq.s32.totalorder %s335, 0
      %s338 = sadd.s32 %s337, 1
      %s339 = scalar_select %p336, %s337, %s338
      %p342 = pneg %p336
      %p343 = scmp.eq.s32.totalorder %s23, 1
      %p344 = por %p342, %p343
      %p345 = scmp.ne.s32.totalorder %s337, %s340
      %p346 = scmp.eq.s32.totalorder %s23, 0
      %p347 = por %p345, %p346
      %p348 = scmp.ne.s32.totalorder %s337, %s340
      %p349 = scmp.eq.s32.totalorder %s28, 1
      %p350 = por %p348, %p349
      %p351 = scmp.ne.s32.totalorder %s340, %s341
      %p352 = scmp.eq.s32.totalorder %s28, 0
      %p353 = por %p351, %p352
      %p354 = scmp.ne.s32.totalorder %s340, %s341
      %p355 = scmp.eq.s32.totalorder %s29, 1
      %p356 = por %p354, %p355
      %p358 = scmp.ne.s32.totalorder %s341, %s357
      %p359 = scmp.eq.s32.totalorder %s29, 0
      %p360 = por %p358, %p359
      %p361 = scmp.le.s32.totalorder 1, %s23
      %p362 = scmp.lt.s32.totalorder %s23, 3
      %p363 = pnand %p361, %p362
      %p364 = pneg %p363
      // Predicated region
      $region9: #{_lambda_.1} parent=5 // pred_check
        _
      $region10: #{_lambda_.1} parent=5 // pred_check_branch
        %366 = sbr.rel (%p363) target = $region12
      $region11: #{_lambda_.1} parent=5 // pred_region
        %s367 = ssub.s32 %s23, 1
        // Predicated region
        $region13: #{_lambda_.1} parent=11 // pred_check
          %p368 = pneg %p70
        $region14: #{_lambda_.1} parent=11 // pred_check_branch
          %370 = sbr.rel (%p368) target = $region16
        $region15: #{_lambda_.1} parent=11 // pred_region
          _
        $region16: #{_lambda_.1} parent=11 // pred_fallthru
          _
        // Predicated region
        $region17: #{_lambda_.1} parent=11 // pred_check
          %p371 = pneg %p91
        $region18: #{_lambda_.1} parent=11 // pred_check_branch
          %373 = sbr.rel (%p371) target = $region20
        $region19: #{_lambda_.1} parent=11 // pred_region
          _
        $region20: #{_lambda_.1} parent=11 // pred_fallthru
          _
        // Predicated region
        $region21: #{_lambda_.1} parent=11 // pred_check
          %p374 = pneg %p112
        $region22: #{_lambda_.1} parent=11 // pred_check_branch
          %376 = sbr.rel (%p374) target = $region24
        $region23: #{_lambda_.1} parent=11 // pred_region
          _
        $region24: #{_lambda_.1} parent=11 // pred_fallthru
          _
        // Predicated region
        $region25: #{_lambda_.1} parent=11 // pred_check
          %p377 = pneg %p133
        $region26: #{_lambda_.1} parent=11 // pred_check_branch
          %379 = sbr.rel (%p377) target = $region28
        $region27: #{_lambda_.1} parent=11 // pred_region
          %s381 = ssub.s32 64, 64
          %382 = vsyncadd [#allocation3], %s381
          %s384 = sshll.u32 [#allocation2], 4
          %s385 = int_to_ptr.vmem [resolvable:$true] %s384
          %387 = dma.hbm_to_vmem [thread:$0]  %s4, 64, %s385, [#allocation3]
        $region28: #{_lambda_.1} parent=11 // pred_fallthru
          _
        // Predicated region
        $region29: #{_lambda_.1} parent=11 // pred_check
          %p388 = pneg %p154
        $region30: #{_lambda_.1} parent=11 // pred_check_branch
          %390 = sbr.rel (%p388) target = $region32
        $region31: #{_lambda_.1} parent=11 // pred_region
          _
        $region32: #{_lambda_.1} parent=11 // pred_fallthru
          _
        // Predicated region
        $region33: #{_lambda_.1} parent=11 // pred_check
          %p391 = pneg %p175
        $region34: #{_lambda_.1} parent=11 // pred_check_branch
          %393 = sbr.rel (%p391) target = $region36
        $region35: #{_lambda_.1} parent=11 // pred_region
          _
        $region36: #{_lambda_.1} parent=11 // pred_fallthru
          _
        // Predicated region
        $region37: #{_lambda_.1} parent=11 // pred_check
          %p394 = pneg %p196
        $region38: #{_lambda_.1} parent=11 // pred_check_branch
          %396 = sbr.rel (%p394) target = $region40
        $region39: #{_lambda_.1} parent=11 // pred_region
          _
        $region40: #{_lambda_.1} parent=11 // pred_fallthru
          _
        // Predicated region
        $region41: #{_lambda_.1} parent=11 // pred_check
          %p397 = pneg %p217
        $region42: #{_lambda_.1} parent=11 // pred_check_branch
          %399 = sbr.rel (%p397) target = $region44
        $region43: #{_lambda_.1} parent=11 // pred_region
          _
        $region44: #{_lambda_.1} parent=11 // pred_fallthru
          _
        // Predicated region
        $region45: #{_lambda_.1} parent=11 // pred_check
          %p400 = pneg %p238
        $region46: #{_lambda_.1} parent=11 // pred_check_branch
          %402 = sbr.rel (%p400) target = $region48
        $region47: #{_lambda_.1} parent=11 // pred_region
          _
        $region48: #{_lambda_.1} parent=11 // pred_fallthru
          _
        // Predicated region
        $region49: #{_lambda_.1} parent=11 // pred_check
          %p403 = pneg %p259
        $region50: #{_lambda_.1} parent=11 // pred_check_branch
          %405 = sbr.rel (%p403) target = $region52
        $region51: #{_lambda_.1} parent=11 // pred_region
          %s407 = ssub.s32 4096, 4096
          %408 = vsyncadd [#allocation5], %s407
          %s409 = sshll.u32 [#allocation4], 4
          %s410 = int_to_ptr.vmem [resolvable:$true] %s409
          %415 = dma.hbm_to_vmem [thread:$0]  %s10, 4096, %s410, [#allocation5], 128, 128, 8
        $region52: #{_lambda_.1} parent=11 // pred_fallthru
          _
        // Predicated region
        $region53: #{_lambda_.1} parent=11 // pred_check
          %p416 = pneg %p280
        $region54: #{_lambda_.1} parent=11 // pred_check_branch
          %418 = sbr.rel (%p416) target = $region56
        $region55: #{_lambda_.1} parent=11 // pred_region
          _
        $region56: #{_lambda_.1} parent=11 // pred_fallthru
          _
        // Predicated region
        $region57: #{_lambda_.1} parent=11 // pred_check
          %p419 = pneg %p301
        $region58: #{_lambda_.1} parent=11 // pred_check_branch
          %421 = sbr.rel (%p419) target = $region60
        $region59: #{_lambda_.1} parent=11 // pred_region
          _
        $region60: #{_lambda_.1} parent=11 // pred_fallthru
          _
      $region12: #{_lambda_.1} parent=5 // pred_fallthru
        _
      %p422 = scmp.lt.s32.totalorder %s23, 2
      // Predicated region
      $region61: #{_lambda_.1} parent=5 // pred_check
        %p423 = pneg %p422
      $region62: #{_lambda_.1} parent=5 // pred_check_branch
        %425 = sbr.rel (%p423) target = $region64
      $region63: #{_lambda_.1} parent=5 // pred_region
        // Predicated region
        $region65: #{_lambda_.1} parent=63 // pred_check
          %p426 = pneg %p43
        $region66: #{_lambda_.1} parent=63 // pred_check_branch
          %428 = sbr.rel (%p426) target = $region68
        $region67: #{_lambda_.1} parent=63 // pred_region
          %p429 = scmp.lt.s32.totalorder %s23, 1
          %s430 = scalar_select %p429, %s23, 1
          %s431 = smul.addr %s430, 2
          %s432 = smul.addr %s431, 4
          %s433 = scalar_lea.vmem %s0, %s432
        $region68: #{_lambda_.1} parent=63 // pred_fallthru
          _
      $region64: #{_lambda_.1} parent=5 // pred_fallthru
        _
      %p434 = scmp.le.s32.totalorder 1, %s23
      %p435 = scmp.lt.s32.totalorder %s23, 3
      %p436 = pnand %p434, %p435
      %p437 = pneg %p436
      // Predicated region
      $region69: #{_lambda_.1} parent=5 // pred_check
        _
      $region70: #{_lambda_.1} parent=5 // pred_check_branch
        %439 = sbr.rel (%p436) target = $region72
      $region71: #{_lambda_.1} parent=5 // pred_region
        %s440 = ssub.s32 %s23, 1
        // Predicated region
        $region73: #{_lambda_.1} parent=71 // pred_check
          %p441 = pneg %p133
        $region74: #{_lambda_.1} parent=71 // pred_check_branch
          %443 = sbr.rel (%p441) target = $region76
        $region75: #{_lambda_.1} parent=71 // pred_region
          %444 = dma.done [#allocation3], 64
        $region76: #{_lambda_.1} parent=71 // pred_fallthru
          _
        // Predicated region
        $region77: #{_lambda_.1} parent=71 // pred_check
          %p445 = pneg %p259
        $region78: #{_lambda_.1} parent=71 // pred_check_branch
          %447 = sbr.rel (%p445) target = $region80
        $region79: #{_lambda_.1} parent=71 // pred_region
          %448 = dma.done [#allocation5], 4096
        $region80: #{_lambda_.1} parent=71 // pred_fallthru
          _
        %p449 = scmp.lt.s32.totalorder %s28, 1
        %s450 = scalar_select %p449, %s28, 1
        %s451 = smul.addr %s450, 2
        %s452 = smul.addr %s451, 4
        %s453 = scalar_lea.vmem %s0, %s452
        %p454 = pneg %p49
        %p455 = pneg %p46
        %p456 = pneg %p70
        %p457 = pneg %p67
        %p458 = pneg %p91
        %p459 = pneg %p88
        %p460 = pneg %p112
        %p461 = pneg %p109
        %p462 = pneg %p133
        %p463 = pneg %p130
        %p464 = pneg %p154
        %p465 = pneg %p151
        %p466 = pneg %p175
        %p467 = pneg %p172
        %p468 = pneg %p196
        %p469 = pneg %p193
        %p470 = pneg %p217
        %p471 = pneg %p214
        %p472 = pneg %p238
        %p473 = pneg %p235
        %p474 = pneg %p259
        %p475 = pneg %p256
        %p476 = pneg %p280
        %p477 = pneg %p277
        %p478 = pneg %p301
        %p479 = pneg %p298
        %p480 = pneg %p327
        %p481 = pneg %p324
        %p482 = scmp.lt.s32.totalorder %s28, 1
        %s483 = scalar_select %p482, %s28, 1
        %s484 = smul.addr %s483, 2
        %s485 = smul.addr %s484, 4
        %s486 = scalar_lea.vmem %s13, %s485
        %p487 = pneg %p353
        %p488 = pneg %p350
        %p489 = scmp.lt.s32.totalorder %s28, 1
        %s490 = scalar_select %p489, %s28, 1
        %s491 = smul.addr %s490, 8
        %s492 = scalar_lea.vmem %s14, %s491
        %p493 = scmp.lt.s32.totalorder %s28, 1
        %s494 = scalar_select %p493, %s28, 1
        %s495 = smul.addr %s494, 2
        %s496 = smul.addr %s495, 4
        %s497 = scalar_lea.vmem %s0, %s496
        %p498 = scmp.lt.s32.totalorder %s28, 1
        %s499 = scalar_select %p498, %s28, 1
        %s500 = smul.addr %s499, 2
        %s501 = smul.addr %s500, 4
        %s502 = scalar_lea.vmem %s13, %s501
        %p503 = scmp.lt.s32.totalorder %s28, 1
        %s504 = scalar_select %p503, %s28, 1
        %s505 = smul.addr %s504, 8
        %s506 = scalar_lea.vmem %s14, %s505
        %v507 = vld [vmem:[%s497] sm:$0xff]
        %v508 = vld [vmem:[%s1] sm:$0xff]
        %v509 = vld [vmem:[%s1 + $0x8] sm:$0xff]
        %v510 = vld [vmem:[%s1 + $0x10] sm:$0x3]
        %v511 = vld [vmem:[%s2] sm:$0x3]
        %v512 = vld [vmem:[%s3] sm:$0xff]
        %v513 = vld [vmem:[%s3 + $0x8] sm:$0xff]
        %v514 = vld [vmem:[%s3 + $0x10] sm:$0x1]
        %v515 = vld [vmem:[%s3 + $0x18] sm:$0x1]
        %v516 = vld [vmem:[#allocation2] sm:$0xf]
        %v517 = vld [vmem:[%s5] sm:$0xf]
        %v518 = vld [vmem:[%s6] sm:$0xf]
        %v520 = vcombine.high %v507, %v507
        %v521 = vrot.slane %v507, 2
        %v522 = vrot.slane %v520, 2
        %vm523 = vcmask 15360
        %v525 = vsel %vm523, %v508, 0
        %v528 = vsel %vm523, %v509, 0
        %v531 = vsel %vm523, %v510, 0
        %vm533 = vcmask 1041408
        %v534 = vsel %vm533, %v521, 0
        %v536 = vsel %vm533, %v522, 0
        %538 = vmatprep.subr.mxu0 %v536
        %539 = vmatpush1.msra.mxu0 %v534
        %540 = vmatprep.subr.mxu0 0.0
        %541 = vmatpush1.msra.mxu0 0.0
        %542 = vmatprep.subr.mxu0 0.0
        %543 = vmatpush1.msra.mxu0 0.0
        %544 = vmatprep.subr.mxu0 0.0
        %545 = vmatpush1.msra.mxu0 0.0
        %546 = vmatprep.subr.mxu0 0.0
        %547 = vmatpush1.msra.mxu0 0.0
        %548 = vmatprep.subr.mxu0 0.0
        %549 = vmatpush1.msra.mxu0 0.0
        %550 = vmatprep.subr.mxu0 0.0
        %551 = vmatpush1.msra.mxu0 0.0
        %552 = vmatprep.subr.mxu0 0.0
        %553 = vmatpush1.msra.mxu0 0.0
        %554 = vmatprep.subr.mxu0 0.0
        %555 = vmatpush1.msra.mxu0 0.0
        %556 = vmatprep.subr.mxu0 0.0
        %557 = vmatpush1.msra.mxu0 0.0
        %558 = vmatprep.subr.mxu0 0.0
        %559 = vmatpush1.msra.mxu0 0.0
        %560 = vmatprep.subr.mxu0 0.0
        %561 = vmatpush1.msra.mxu0 0.0
        %562 = vmatprep.subr.mxu0 0.0
        %563 = vmatpush1.msra.mxu0 0.0
        %564 = vmatprep.subr.mxu0 0.0
        %565 = vmatpush1.msra.mxu0 0.0
        %566 = vmatprep.subr.mxu0 0.0
        %567 = vmatpush1.msra.mxu0 0.0
        %568 = vmatprep.subr.mxu0 0.0
        %569 = vmatpush1.msra.mxu0 0.0
        %570 = vmatprep.subr.mxu0 0.0
        %571 = vmatpush1.msra.mxu0 0.0
        %572 = vmatprep.subr.mxu0 0.0
        %573 = vmatpush1.msra.mxu0 0.0
        %574 = vmatprep.subr.mxu0 0.0
        %575 = vmatpush1.msra.mxu0 0.0
        %576 = vmatprep.subr.mxu0 0.0
        %577 = vmatpush1.msra.mxu0 0.0
        %578 = vmatprep.subr.mxu0 0.0
        %579 = vmatpush1.msra.mxu0 0.0
        %580 = vmatprep.subr.mxu0 0.0
        %581 = vmatpush1.msra.mxu0 0.0
        %582 = vmatprep.subr.mxu0 0.0
        %583 = vmatpush1.msra.mxu0 0.0
        %584 = vmatprep.subr.mxu0 0.0
        %585 = vmatpush1.msra.mxu0 0.0
        %586 = vmatprep.subr.mxu0 0.0
        %587 = vmatpush1.msra.mxu0 0.0
        %588 = vmatprep.subr.mxu0 0.0
        %589 = vmatpush1.msra.mxu0 0.0
        %590 = vmatprep.subr.mxu0 0.0
        %591 = vmatpush1.msra.mxu0 0.0
        %592 = vmatprep.subr.mxu0 0.0
        %593 = vmatpush1.msra.mxu0 0.0
        %594 = vmatprep.subr.mxu0 0.0
        %595 = vmatpush1.msra.mxu0 0.0
        %596 = vmatprep.subr.mxu0 0.0
        %597 = vmatpush1.msra.mxu0 0.0
        %598 = vmatprep.subr.mxu0 0.0
        %599 = vmatpush1.msra.mxu0 0.0
        %600 = vmatprep.subr.mxu0 0.0
        %601 = vmatpush1.msra.mxu0 0.0
        %602 = vmatprep.mubr.f32.mxu0 0.0
        %603 = vmatmul.mubr.f32.gmra.mrb[0].mxu0 %v525
        %v604 = vpop.f32.mrb[0].mxu0
        %v605 = vadd.f32 0.0, %v604
        %v606 = vpop.f32.mrb[0].mxu0
        %v607 = vadd.f32 0.0, %v606
        %608 = vmatprep.mubr.f32.mxu0 0.0
        %609 = vmatmul.mubr.f32.gmra.mrb[0].mxu0 %v528
        %v610 = vpop.f32.mrb[0].mxu0
        %v611 = vadd.f32 0.0, %v610
        %v612 = vpop.f32.mrb[0].mxu0
        %v613 = vadd.f32 0.0, %v612
        %614 = vmatprep.mubr.f32.mxu0 0.0
        %615 = vmatmul.mubr.f32.gmra.mrb[0].mxu0 %v531
        %v616 = vpop.f32.mrb[0].mxu0
        %v617 = vadd.f32 0.0, %v616
        %v618 = vpop.f32.mrb[0].mxu0
        %v619 = vadd.f32 0.0, %v618
        %620 = vdwg.mxu0
        %622 = vrot.lane.b32.xlu0 %v607, 17
        %v623 = vpop.permute.xlu0 %622
        %626 = vrot.lane.b32.xlu0 %v605, 17
        %v627 = vpop.permute.xlu0 %626
        %vm628 = vcmask 138240
        %v629 = vsel %vm628, %v627, %v623
        %v632 = vsel %vm628, %v623, %v627
        %v633 = vlaneseq
        %v634 = vshrl.u32 %v633, 7
        %v635 = vsub.s32 0, %v634
        %v636 = vrot.slane %v512, %v635
        %v637 = vlaneseq
        %v638 = vshrl.u32 %v637, 7
        %v639 = vsub.s32 0, %v638
        %v640 = vrot.slane %v513, %v639
        %v641 = vmul.f32 %v632, %v636
        %v642 = vmul.f32 %v629, %v640
        %643 = vrot.lane.b32.xlu0 %v607, 16
        %v644 = vpop.permute.xlu0 %643
        %646 = vrot.lane.b32.xlu0 %v605, 16
        %v647 = vpop.permute.xlu0 %646
        %vm648 = vcmask 130048
        %v649 = vsel %vm648, %v647, %v644
        %v652 = vsel %vm648, %v644, %v647
        %v653 = vlaneseq
        %v654 = vshrl.u32 %v653, 7
        %v655 = vsub.s32 1, %v654
        %v656 = vrot.slane %v512, %v655
        %v657 = vlaneseq
        %v658 = vshrl.u32 %v657, 7
        %v659 = vsub.s32 1, %v658
        %v660 = vrot.slane %v513, %v659
        %v661 = vmul.f32 %v652, %v656
        %v662 = vmul.f32 %v649, %v660
        %v665 = vrot.slane %v661, 2
        %v666 = vrot.slane %v662, 2
        %v669 = vadd.f32 %v641, %v665
        %v670 = vadd.f32 %v642, %v666
        %671 = vrot.lane.b32.xlu0 %v607, 15
        %v672 = vpop.permute.xlu0 %671
        %674 = vrot.lane.b32.xlu0 %v605, 15
        %v675 = vpop.permute.xlu0 %674
        %vm676 = vcmask 121856
        %v677 = vsel %vm676, %v675, %v672
        %v680 = vsel %vm676, %v672, %v675
        %v681 = vlaneseq
        %v682 = vshrl.u32 %v681, 7
        %v683 = vsub.s32 2, %v682
        %v684 = vrot.slane %v512, %v683
        %v685 = vlaneseq
        %v686 = vshrl.u32 %v685, 7
        %v687 = vsub.s32 2, %v686
        %v688 = vrot.slane %v513, %v687
        %v689 = vmul.f32 %v680, %v684
        %v690 = vmul.f32 %v677, %v688
        %v693 = vrot.slane %v689, 4
        %v694 = vrot.slane %v690, 4
        %v697 = vadd.f32 %v669, %v693
        %v698 = vadd.f32 %v670, %v694
        %699 = vrot.lane.b32.xlu0 %v607, 1
        %v700 = vpop.permute.xlu0 %699
        %702 = vrot.lane.b32.xlu0 %v605, 1
        %v703 = vpop.permute.xlu0 %702
        %vm704 = vcmask 7168
        %v705 = vsel %vm704, %v703, %v700
        %v708 = vsel %vm704, %v700, %v703
        %v709 = vlaneseq
        %v710 = vshrl.u32 %v709, 7
        %v711 = vsub.s32 3, %v710
        %v712 = vrot.slane %v512, %v711
        %v713 = vlaneseq
        %v714 = vshrl.u32 %v713, 7
        %v715 = vsub.s32 3, %v714
        %v716 = vrot.slane %v513, %v715
        %v717 = vmul.f32 %v708, %v712
        %v718 = vmul.f32 %v705, %v716
        %v721 = vrot.slane %v717, 6
        %v722 = vrot.slane %v718, 6
        %v725 = vadd.f32 %v697, %v721
        %v726 = vadd.f32 %v698, %v722
        %v727 = vadd.f32 %v725, %v611
        %v728 = vadd.f32 %v726, %v613
        %731 = vrot.lane.b32.xlu0 %v611, 127
        %v732 = vpop.permute.xlu0 %731
        %733 = vrot.lane.b32.xlu0 %v613, 127
        %v734 = vpop.permute.xlu0 %733
        %vm735 = vcmask 1039360
        %v736 = vsel %vm735, %v732, %v734
        %v740 = vsel %vm735, %v734, %v732
        %v741 = vlaneseq
        %v742 = vshrl.u32 %v741, 7
        %v743 = vsub.s32 5, %v742
        %v744 = vrot.slane %v512, %v743
        %v745 = vlaneseq
        %v746 = vshrl.u32 %v745, 7
        %v747 = vsub.s32 5, %v746
        %v748 = vrot.slane %v513, %v747
        %v749 = vmul.f32 %v736, %v744
        %v750 = vmul.f32 %v740, %v748
        %v753 = vrot.slane %v749, 2
        %v754 = vrot.slane %v750, 2
        %v757 = vadd.f32 %v727, %v753
        %v758 = vadd.f32 %v728, %v754
        %759 = vrot.lane.b32.xlu0 %v611, 113
        %v760 = vpop.permute.xlu0 %759
        %761 = vrot.lane.b32.xlu0 %v613, 113
        %v762 = vpop.permute.xlu0 %761
        %vm763 = vcmask 924672
        %v764 = vsel %vm763, %v760, %v762
        %v768 = vsel %vm763, %v762, %v760
        %v769 = vlaneseq
        %v770 = vshrl.u32 %v769, 7
        %v771 = vsub.s32 6, %v770
        %v772 = vrot.slane %v512, %v771
        %v773 = vlaneseq
        %v774 = vshrl.u32 %v773, 7
        %v775 = vsub.s32 6, %v774
        %v776 = vrot.slane %v513, %v775
        %v777 = vmul.f32 %v764, %v772
        %v778 = vmul.f32 %v768, %v776
        %v781 = vrot.slane %v777, 4
        %v782 = vrot.slane %v778, 4
        %v785 = vadd.f32 %v757, %v781
        %v786 = vadd.f32 %v758, %v782
        %787 = vrot.lane.b32.xlu0 %v611, 112
        %v788 = vpop.permute.xlu0 %787
        %789 = vrot.lane.b32.xlu0 %v613, 112
        %v790 = vpop.permute.xlu0 %789
        %vm791 = vcmask 916480
        %v792 = vsel %vm791, %v788, %v790
        %v796 = vsel %vm791, %v790, %v788
        %v797 = vlaneseq
        %v798 = vshrl.u32 %v797, 7
        %v799 = vsub.s32 7, %v798
        %v800 = vrot.slane %v512, %v799
        %v801 = vlaneseq
        %v802 = vshrl.u32 %v801, 7
        %v803 = vsub.s32 7, %v802
        %v804 = vrot.slane %v513, %v803
        %v805 = vmul.f32 %v792, %v800
        %v806 = vmul.f32 %v796, %v804
        %v809 = vrot.slane %v805, 6
        %v810 = vrot.slane %v806, 6
        %v813 = vadd.f32 %v785, %v809
        %v814 = vadd.f32 %v786, %v810
        %817 = vrot.lane.b32.xlu0 %v617, 111
        %v818 = vpop.permute.xlu0 %817
        %819 = vrot.lane.b32.xlu0 %v619, 111
        %v820 = vpop.permute.xlu0 %819
        %vm821 = vcmask 908288
        %v822 = vsel %vm821, %v818, %v820
        %v826 = vsel %vm821, %v820, %v818
        %v827 = vlaneseq
        %v828 = vshrl.u32 %v827, 7
        %v829 = vsub.s32 0, %v828
        %v830 = vrot.slane %v514, %v829
        %v831 = vlaneseq
        %v832 = vshrl.u32 %v831, 7
        %v833 = vsub.s32 0, %v832
        %v834 = vrot.slane %v515, %v833
        %v835 = vmul.f32 %v822, %v830
        %v836 = vmul.f32 %v826, %v834
        %v837 = vadd.f32 %v813, %v835
        %v838 = vadd.f32 %v814, %v836
        %840 = vset.pattern.permute.xlu0 0
        %841 = vperm.xlu0 %840, %v511
        %v842 = vpop.permute.xlu0 %841
        %v844 = vadd.f32 %v837, %v842
        %v845 = vadd.f32 %v838, %v842
        %v846 = vmax.f32 %v844, 0.0
        %v847 = vmax.f32 %v845, 0.0
        %v849 = vsel %vm523, %v517, 0
        %v851 = vsel %vm533, %v507, 0
        %v853 = vsel %vm533, %v520, 0
        %855 = vmatprep.subr.mxu0 %v853
        %856 = vmatpush1.msra.mxu0 %v851
        %857 = vmatprep.subr.mxu0 0.0
        %858 = vmatpush1.msra.mxu0 0.0
        %859 = vmatprep.subr.mxu0 0.0
        %860 = vmatpush1.msra.mxu0 0.0
        %861 = vmatprep.subr.mxu0 0.0
        %862 = vmatpush1.msra.mxu0 0.0
        %863 = vmatprep.subr.mxu0 0.0
        %864 = vmatpush1.msra.mxu0 0.0
        %865 = vmatprep.subr.mxu0 0.0
        %866 = vmatpush1.msra.mxu0 0.0
        %867 = vmatprep.subr.mxu0 0.0
        %868 = vmatpush1.msra.mxu0 0.0
        %869 = vmatprep.subr.mxu0 0.0
        %870 = vmatpush1.msra.mxu0 0.0
        %871 = vmatprep.subr.mxu0 0.0
        %872 = vmatpush1.msra.mxu0 0.0
        %873 = vmatprep.subr.mxu0 0.0
        %874 = vmatpush1.msra.mxu0 0.0
        %875 = vmatprep.subr.mxu0 0.0
        %876 = vmatpush1.msra.mxu0 0.0
        %877 = vmatprep.subr.mxu0 0.0
        %878 = vmatpush1.msra.mxu0 0.0
        %879 = vmatprep.subr.mxu0 0.0
        %880 = vmatpush1.msra.mxu0 0.0
        %881 = vmatprep.subr.mxu0 0.0
        %882 = vmatpush1.msra.mxu0 0.0
        %883 = vmatprep.subr.mxu0 0.0
        %884 = vmatpush1.msra.mxu0 0.0
        %885 = vmatprep.subr.mxu0 0.0
        %886 = vmatpush1.msra.mxu0 0.0
        %887 = vmatprep.subr.mxu0 0.0
        %888 = vmatpush1.msra.mxu0 0.0
        %889 = vmatprep.subr.mxu0 0.0
        %890 = vmatpush1.msra.mxu0 0.0
        %891 = vmatprep.subr.mxu0 0.0
        %892 = vmatpush1.msra.mxu0 0.0
        %893 = vmatprep.subr.mxu0 0.0
        %894 = vmatpush1.msra.mxu0 0.0
        %895 = vmatprep.subr.mxu0 0.0
        %896 = vmatpush1.msra.mxu0 0.0
        %897 = vmatprep.subr.mxu0 0.0
        %898 = vmatpush1.msra.mxu0 0.0
        %899 = vmatprep.subr.mxu0 0.0
        %900 = vmatpush1.msra.mxu0 0.0
        %901 = vmatprep.subr.mxu0 0.0
        %902 = vmatpush1.msra.mxu0 0.0
        %903 = vmatprep.subr.mxu0 0.0
        %904 = vmatpush1.msra.mxu0 0.0
        %905 = vmatprep.subr.mxu0 0.0
        %906 = vmatpush1.msra.mxu0 0.0
        %907 = vmatprep.subr.mxu0 0.0
        %908 = vmatpush1.msra.mxu0 0.0
        %909 = vmatprep.subr.mxu0 0.0
        %910 = vmatpush1.msra.mxu0 0.0
        %911 = vmatprep.subr.mxu0 0.0
        %912 = vmatpush1.msra.mxu0 0.0
        %913 = vmatprep.subr.mxu0 0.0
        %914 = vmatpush1.msra.mxu0 0.0
        %915 = vmatprep.subr.mxu0 0.0
        %916 = vmatpush1.msra.mxu0 0.0
        %917 = vmatprep.subr.mxu0 0.0
        %918 = vmatpush1.msra.mxu0 0.0
        %919 = vmatprep.mubr.f32.mxu0 0.0
        %920 = vmatmul.mubr.f32.gmra.mrb[0].mxu0 %v849
        %v921 = vpop.f32.mrb[0].mxu0
        %v922 = vadd.f32 0.0, %v921
        %v923 = vpop.f32.mrb[0].mxu0
        %v924 = vadd.f32 0.0, %v923
        %925 = vdwg.mxu0
        %v927 = vsel %vm523, %v516, 0
        %v930 = vsel %vm533, %v846, 0
        %v933 = vsel %vm533, %v847, 0
        %935 = vmatprep.subr.mxu0 %v933
        %936 = vmatpush1.msra.mxu0 %v930
        %937 = vmatprep.subr.mxu0 0.0
        %938 = vmatpush1.msra.mxu0 0.0
        %939 = vmatprep.subr.mxu0 0.0
        %940 = vmatpush1.msra.mxu0 0.0
        %941 = vmatprep.subr.mxu0 0.0
        %942 = vmatpush1.msra.mxu0 0.0
        %943 = vmatprep.subr.mxu0 0.0
        %944 = vmatpush1.msra.mxu0 0.0
        %945 = vmatprep.subr.mxu0 0.0
        %946 = vmatpush1.msra.mxu0 0.0
        %947 = vmatprep.subr.mxu0 0.0
        %948 = vmatpush1.msra.mxu0 0.0
        %949 = vmatprep.subr.mxu0 0.0
        %950 = vmatpush1.msra.mxu0 0.0
        %951 = vmatprep.subr.mxu0 0.0
        %952 = vmatpush1.msra.mxu0 0.0
        %953 = vmatprep.subr.mxu0 0.0
        %954 = vmatpush1.msra.mxu0 0.0
        %955 = vmatprep.subr.mxu0 0.0
        %956 = vmatpush1.msra.mxu0 0.0
        %957 = vmatprep.subr.mxu0 0.0
        %958 = vmatpush1.msra.mxu0 0.0
        %959 = vmatprep.subr.mxu0 0.0
        %960 = vmatpush1.msra.mxu0 0.0
        %961 = vmatprep.subr.mxu0 0.0
        %962 = vmatpush1.msra.mxu0 0.0
        %963 = vmatprep.subr.mxu0 0.0
        %964 = vmatpush1.msra.mxu0 0.0
        %965 = vmatprep.subr.mxu0 0.0
        %966 = vmatpush1.msra.mxu0 0.0
        %967 = vmatprep.subr.mxu0 0.0
        %968 = vmatpush1.msra.mxu0 0.0
        %969 = vmatprep.subr.mxu0 0.0
        %970 = vmatpush1.msra.mxu0 0.0
        %971 = vmatprep.subr.mxu0 0.0
        %972 = vmatpush1.msra.mxu0 0.0
        %973 = vmatprep.subr.mxu0 0.0
        %974 = vmatpush1.msra.mxu0 0.0
        %975 = vmatprep.subr.mxu0 0.0
        %976 = vmatpush1.msra.mxu0 0.0
        %977 = vmatprep.subr.mxu0 0.0
        %978 = vmatpush1.msra.mxu0 0.0
        %979 = vmatprep.subr.mxu0 0.0
        %980 = vmatpush1.msra.mxu0 0.0
        %981 = vmatprep.subr.mxu0 0.0
        %982 = vmatpush1.msra.mxu0 0.0
        %983 = vmatprep.subr.mxu0 0.0
        %984 = vmatpush1.msra.mxu0 0.0
        %985 = vmatprep.subr.mxu0 0.0
        %986 = vmatpush1.msra.mxu0 0.0
        %987 = vmatprep.subr.mxu0 0.0
        %988 = vmatpush1.msra.mxu0 0.0
        %989 = vmatprep.subr.mxu0 0.0
        %990 = vmatpush1.msra.mxu0 0.0
        %991 = vmatprep.subr.mxu0 0.0
        %992 = vmatpush1.msra.mxu0 0.0
        %993 = vmatprep.subr.mxu0 0.0
        %994 = vmatpush1.msra.mxu0 0.0
        %995 = vmatprep.subr.mxu0 0.0
        %996 = vmatpush1.msra.mxu0 0.0
        %997 = vmatprep.subr.mxu0 0.0
        %998 = vmatpush1.msra.mxu0 0.0
        %999 = vmatprep.mubr.f32.mxu0 0.0
        %1000 = vmatmul.mubr.f32.gmra.mrb[0].mxu0 %v927
        %v1001 = vpop.f32.mrb[0].mxu0
        %v1002 = vadd.f32 %v922, %v1001
        %v1003 = vpop.f32.mrb[0].mxu0
        %v1004 = vadd.f32 %v924, %v1003
        %1005 = vdwg.mxu0
        %1007 = vset.pattern.permute.xlu0 0
        %1008 = vperm.xlu0 %1007, %v518
        %v1009 = vpop.permute.xlu0 %1008
        %v1011 = vadd.f32 %v1002, %v1009
        %v1012 = vadd.f32 %v1004, %v1009
        %v1013 = vmax.f32 %v1011, 0.0
        %v1014 = vmax.f32 %v1012, 0.0
        %v1017 = vcombine.low %v1013, %v1014
        %1019 = vst [vmem:[%s502] sm:$0xff] %v1017
        %v1020 = vld [vmem:[%s7] sm:$0xff]
        %v1021 = vld [vmem:[%s7 + $0x8] sm:$0xff]
        %v1022 = vld [vmem:[%s7 + $0x10] sm:$0xff]
        %v1023 = vld [vmem:[%s7 + $0x18] sm:$0xff]
        %v1024 = vld [vmem:[%s7 + $0x20] sm:$0xff]
        %v1025 = vld [vmem:[%s7 + $0x28] sm:$0xff]
        %v1026 = vld [vmem:[%s7 + $0x30] sm:$0xff]
        %v1027 = vld [vmem:[%s7 + $0x38] sm:$0xff]
        %v1028 = vld [vmem:[%s7 + $0x40] sm:$0xff]
        %v1029 = vld [vmem:[%s8] sm:$0xff]
        %v1030 = vld [vmem:[%s9] sm:$0xff]
        %v1031 = vld [vmem:[%s9 + $0x8] sm:$0xff]
        %v1032 = vld [vmem:[%s9 + $0x10] sm:$0x1]
        %v1033 = vld [vmem:[%s9 + $0x18] sm:$0x1]
        %v1034 = vld [vmem:[#allocation4] sm:$0xff]
        %v1035 = vld [vmem:[#allocation4 + $0x8] sm:$0xff]
        %v1036 = vld [vmem:[#allocation4 + $0x10] sm:$0xff]
        %v1037 = vld [vmem:[#allocation4 + $0x18] sm:$0xff]
        %v1038 = vld [vmem:[#allocation4 + $0x20] sm:$0xff]
        %v1039 = vld [vmem:[#allocation4 + $0x28] sm:$0xff]
        %v1040 = vld [vmem:[#allocation4 + $0x30] sm:$0xff]
        %v1041 = vld [vmem:[#allocation4 + $0x38] sm:$0xff]
        %v1042 = vld [vmem:[#allocation4 + $0x40] sm:$0xff]
        %v1043 = vld [vmem:[#allocation4 + $0x48] sm:$0xff]
        %v1044 = vld [vmem:[#allocation4 + $0x50] sm:$0xff]
        %v1045 = vld [vmem:[#allocation4 + $0x58] sm:$0xff]
        %v1046 = vld [vmem:[#allocation4 + $0x60] sm:$0xff]
        %v1047 = vld [vmem:[#allocation4 + $0x68] sm:$0xff]
        %v1048 = vld [vmem:[#allocation4 + $0x70] sm:$0xff]
        %v1049 = vld [vmem:[#allocation4 + $0x78] sm:$0xff]
        %v1050 = vld [vmem:[#allocation4 + $0x80] sm:$0xff]
        %v1051 = vld [vmem:[#allocation4 + $0x88] sm:$0xff]
        %v1052 = vld [vmem:[#allocation4 + $0x90] sm:$0xff]
        %v1053 = vld [vmem:[#allocation4 + $0x98] sm:$0xff]
        %v1054 = vld [vmem:[#allocation4 + $0xa0] sm:$0xff]
        %v1055 = vld [vmem:[#allocation4 + $0xa8] sm:$0xff]
        %v1056 = vld [vmem:[#allocation4 + $0xb0] sm:$0xff]
        %v1057 = vld [vmem:[#allocation4 + $0xb8] sm:$0xff]
        %v1058 = vld [vmem:[#allocation4 + $0xc0] sm:$0xff]
        %v1059 = vld [vmem:[#allocation4 + $0xc8] sm:$0xff]
        %v1060 = vld [vmem:[#allocation4 + $0xd0] sm:$0xff]
        %v1061 = vld [vmem:[#allocation4 + $0xd8] sm:$0xff]
        %v1062 = vld [vmem:[#allocation4 + $0xe0] sm:$0xff]
        %v1063 = vld [vmem:[#allocation4 + $0xe8] sm:$0xff]
        %v1064 = vld [vmem:[#allocation4 + $0xf0] sm:$0xff]
        %v1065 = vld [vmem:[#allocation4 + $0xf8] sm:$0xff]
        %v1066 = vld [vmem:[%s11] sm:$0xff]
        %v1067 = vld [vmem:[%s12] sm:$0xff]
        %vm1068 = vcmask 31744
        %v1070 = vsel %vm1068, %v1020, 0
        %v1073 = vsel %vm1068, %v1021, 0
        %v1076 = vsel %vm1068, %v1022, 0
        %v1079 = vsel %vm1068, %v1023, 0
        %v1082 = vsel %vm1068, %v1024, 0
        %v1085 = vsel %vm1068, %v1025, 0
        %v1088 = vsel %vm1068, %v1026, 0
        %v1091 = vsel %vm1068, %v1027, 0
        %v1094 = vsel %vm1068, %v1028, 0
        %vm1096 = vcmask 1043456
        %v1097 = vsel %vm1096, %v1013, 0
        %v1099 = vsel %vm1096, %v1014, 0
        %1101 = vmatprep.subr.mxu0 %v1099
        %1102 = vmatpush1.msra.mxu0 %v1097
        %1103 = vmatprep.subr.mxu0 0.0
        %1104 = vmatpush1.msra.mxu0 0.0
        %1105 = vmatprep.subr.mxu0 0.0
        %1106 = vmatpush1.msra.mxu0 0.0
        %1107 = vmatprep.subr.mxu0 0.0
        %1108 = vmatpush1.msra.mxu0 0.0
        %1109 = vmatprep.subr.mxu0 0.0
        %1110 = vmatpush1.msra.mxu0 0.0
        %1111 = vmatprep.subr.mxu0 0.0
        %1112 = vmatpush1.msra.mxu0 0.0
        %1113 = vmatprep.subr.mxu0 0.0
        %1114 = vmatpush1.msra.mxu0 0.0
        %1115 = vmatprep.subr.mxu0 0.0
        %1116 = vmatpush1.msra.mxu0 0.0
        %1117 = vmatprep.subr.mxu0 0.0
        %1118 = vmatpush1.msra.mxu0 0.0
        %1119 = vmatprep.subr.mxu0 0.0
        %1120 = vmatpush1.msra.mxu0 0.0
        %1121 = vmatprep.subr.mxu0 0.0
        %1122 = vmatpush1.msra.mxu0 0.0
        %1123 = vmatprep.subr.mxu0 0.0
        %1124 = vmatpush1.msra.mxu0 0.0
        %1125 = vmatprep.subr.mxu0 0.0
        %1126 = vmatpush1.msra.mxu0 0.0
        %1127 = vmatprep.subr.mxu0 0.0
        %1128 = vmatpush1.msra.mxu0 0.0
        %1129 = vmatprep.subr.mxu0 0.0
        %1130 = vmatpush1.msra.mxu0 0.0
        %1131 = vmatprep.subr.mxu0 0.0
        %1132 = vmatpush1.msra.mxu0 0.0
        %1133 = vmatprep.subr.mxu0 0.0
        %1134 = vmatpush1.msra.mxu0 0.0
        %1135 = vmatprep.subr.mxu0 0.0
        %1136 = vmatpush1.msra.mxu0 0.0
        %1137 = vmatprep.subr.mxu0 0.0
        %1138 = vmatpush1.msra.mxu0 0.0
        %1139 = vmatprep.subr.mxu0 0.0
        %1140 = vmatpush1.msra.mxu0 0.0
        %1141 = vmatprep.subr.mxu0 0.0
        %1142 = vmatpush1.msra.mxu0 0.0
        %1143 = vmatprep.subr.mxu0 0.0
        %1144 = vmatpush1.msra.mxu0 0.0
        %1145 = vmatprep.subr.mxu0 0.0
        %1146 = vmatpush1.msra.mxu0 0.0
        %1147 = vmatprep.subr.mxu0 0.0
        %1148 = vmatpush1.msra.mxu0 0.0
        %1149 = vmatprep.subr.mxu0 0.0
        %1150 = vmatpush1.msra.mxu0 0.0
        %1151 = vmatprep.subr.mxu0 0.0
        %1152 = vmatpush1.msra.mxu0 0.0
        %1153 = vmatprep.subr.mxu0 0.0
        %1154 = vmatpush1.msra.mxu0 0.0
        %1155 = vmatprep.subr.mxu0 0.0
        %1156 = vmatpush1.msra.mxu0 0.0
        %1157 = vmatprep.subr.mxu0 0.0
        %1158 = vmatpush1.msra.mxu0 0.0
        %1159 = vmatprep.subr.mxu0 0.0
        %1160 = vmatpush1.msra.mxu0 0.0
        %1161 = vmatprep.subr.mxu0 0.0
        %1162 = vmatpush1.msra.mxu0 0.0
        %1163 = vmatprep.subr.mxu0 0.0
        %1164 = vmatpush1.msra.mxu0 0.0
        %1165 = vmatprep.mubr.f32.mxu0 0.0
        %1166 = vmatmul.mubr.f32.gmra.mrb[0].mxu0 %v1070
        %v1167 = vpop.f32.mrb[0].mxu0
        %v1168 = vadd.f32 0.0, %v1167
        %v1169 = vpop.f32.mrb[0].mxu0
        %v1170 = vadd.f32 0.0, %v1169
        %1171 = vmatprep.mubr.f32.mxu0 0.0
        %1172 = vmatmul.mubr.f32.gmra.mrb[0].mxu0 %v1073
        %v1173 = vpop.f32.mrb[0].mxu0
        %v1174 = vadd.f32 0.0, %v1173
        %v1175 = vpop.f32.mrb[0].mxu0
        %v1176 = vadd.f32 0.0, %v1175
        %1177 = vmatprep.mubr.f32.mxu0 0.0
        %1178 = vmatmul.mubr.f32.gmra.mrb[0].mxu0 %v1076
        %v1179 = vpop.f32.mrb[0].mxu0
        %v1180 = vadd.f32 0.0, %v1179
        %v1181 = vpop.f32.mrb[0].mxu0
        %v1182 = vadd.f32 0.0, %v1181
        %1183 = vmatprep.mubr.f32.mxu0 0.0
        %1184 = vmatmul.mubr.f32.gmra.mrb[0].mxu0 %v1079
        %v1185 = vpop.f32.mrb[0].mxu0
        %v1186 = vadd.f32 0.0, %v1185
        %v1187 = vpop.f32.mrb[0].mxu0
        %v1188 = vadd.f32 0.0, %v1187
        %1189 = vmatprep.mubr.f32.mxu0 0.0
        %1190 = vmatmul.mubr.f32.gmra.mrb[0].mxu0 %v1082
        %v1191 = vpop.f32.mrb[0].mxu0
        %v1192 = vadd.f32 0.0, %v1191
        %v1193 = vpop.f32.mrb[0].mxu0
        %v1194 = vadd.f32 0.0, %v1193
        %1195 = vmatprep.mubr.f32.mxu0 0.0
        %1196 = vmatmul.mubr.f32.gmra.mrb[0].mxu0 %v1085
        %v1197 = vpop.f32.mrb[0].mxu0
        %v1198 = vadd.f32 0.0, %v1197
        %v1199 = vpop.f32.mrb[0].mxu0
        %v1200 = vadd.f32 0.0, %v1199
        %1201 = vmatprep.mubr.f32.mxu0 0.0
        %1202 = vmatmul.mubr.f32.gmra.mrb[0].mxu0 %v1088
        %v1203 = vpop.f32.mrb[0].mxu0
        %v1204 = vadd.f32 0.0, %v1203
        %v1205 = vpop.f32.mrb[0].mxu0
        %v1206 = vadd.f32 0.0, %v1205
        %1207 = vmatprep.mubr.f32.mxu0 0.0
        %1208 = vmatmul.mubr.f32.gmra.mrb[0].mxu0 %v1091
        %v1209 = vpop.f32.mrb[0].mxu0
        %v1210 = vadd.f32 0.0, %v1209
        %v1211 = vpop.f32.mrb[0].mxu0
        %v1212 = vadd.f32 0.0, %v1211
        %1213 = vmatprep.mubr.f32.mxu0 0.0
        %1214 = vmatmul.mubr.f32.gmra.mrb[0].mxu0 %v1094
        %v1215 = vpop.f32.mrb[0].mxu0
        %v1216 = vadd.f32 0.0, %v1215
        %v1217 = vpop.f32.mrb[0].mxu0
        %v1218 = vadd.f32 0.0, %v1217
        %1219 = vdwg.mxu0
        %1221 = vrot.lane.b32.xlu0 %v1170, 17
        %v1222 = vpop.permute.xlu0 %1221
        %1225 = vrot.lane.b32.xlu0 %v1168, 17
        %v1226 = vpop.permute.xlu0 %1225
        %v1227 = vsel %vm628, %v1226, %v1222
        %v1230 = vsel %vm628, %v1222, %v1226
        %v1231 = vlaneseq
        %v1232 = vshrl.u32 %v1231, 7
        %v1233 = vsub.s32 0, %v1232
        %v1234 = vrot.slane %v1030, %v1233
        %v1235 = vlaneseq
        %v1236 = vshrl.u32 %v1235, 7
        %v1237 = vsub.s32 0, %v1236
        %v1238 = vrot.slane %v1031, %v1237
        %v1239 = vmul.f32 %v1230, %v1234
        %v1240 = vmul.f32 %v1227, %v1238
        %1242 = vrot.lane.b32.xlu0 %v1176, 16
        %v1243 = vpop.permute.xlu0 %1242
        %1246 = vrot.lane.b32.xlu0 %v1174, 16
        %v1247 = vpop.permute.xlu0 %1246
        %v1248 = vsel %vm648, %v1247, %v1243
        %v1251 = vsel %vm648, %v1243, %v1247
        %v1252 = vlaneseq
        %v1253 = vshrl.u32 %v1252, 7
        %v1254 = vsub.s32 1, %v1253
        %v1255 = vrot.slane %v1030, %v1254
        %v1256 = vlaneseq
        %v1257 = vshrl.u32 %v1256, 7
        %v1258 = vsub.s32 1, %v1257
        %v1259 = vrot.slane %v1031, %v1258
        %v1260 = vmul.f32 %v1251, %v1255
        %v1261 = vmul.f32 %v1248, %v1259
        %v1262 = vadd.f32 %v1239, %v1260
        %v1263 = vadd.f32 %v1240, %v1261
        %1265 = vrot.lane.b32.xlu0 %v1182, 15
        %v1266 = vpop.permute.xlu0 %1265
        %1269 = vrot.lane.b32.xlu0 %v1180, 15
        %v1270 = vpop.permute.xlu0 %1269
        %v1271 = vsel %vm676, %v1270, %v1266
        %v1274 = vsel %vm676, %v1266, %v1270
        %v1275 = vlaneseq
        %v1276 = vshrl.u32 %v1275, 7
        %v1277 = vsub.s32 2, %v1276
        %v1278 = vrot.slane %v1030, %v1277
        %v1279 = vlaneseq
        %v1280 = vshrl.u32 %v1279, 7
        %v1281 = vsub.s32 2, %v1280
        %v1282 = vrot.slane %v1031, %v1281
        %v1283 = vmul.f32 %v1274, %v1278
        %v1284 = vmul.f32 %v1271, %v1282
        %v1285 = vadd.f32 %v1262, %v1283
        %v1286 = vadd.f32 %v1263, %v1284
        %1288 = vrot.lane.b32.xlu0 %v1188, 1
        %v1289 = vpop.permute.xlu0 %1288
        %1292 = vrot.lane.b32.xlu0 %v1186, 1
        %v1293 = vpop.permute.xlu0 %1292
        %v1294 = vsel %vm704, %v1293, %v1289
        %v1297 = vsel %vm704, %v1289, %v1293
        %v1298 = vlaneseq
        %v1299 = vshrl.u32 %v1298, 7
        %v1300 = vsub.s32 3, %v1299
        %v1301 = vrot.slane %v1030, %v1300
        %v1302 = vlaneseq
        %v1303 = vshrl.u32 %v1302, 7
        %v1304 = vsub.s32 3, %v1303
        %v1305 = vrot.slane %v1031, %v1304
        %v1306 = vmul.f32 %v1297, %v1301
        %v1307 = vmul.f32 %v1294, %v1305
        %v1308 = vadd.f32 %v1285, %v1306
        %v1309 = vadd.f32 %v1286, %v1307
        %v1310 = vadd.f32 %v1308, %v1192
        %v1311 = vadd.f32 %v1309, %v1194
        %1314 = vrot.lane.b32.xlu0 %v1198, 127
        %v1315 = vpop.permute.xlu0 %1314
        %1316 = vrot.lane.b32.xlu0 %v1200, 127
        %v1317 = vpop.permute.xlu0 %1316
        %v1318 = vsel %vm735, %v1315, %v1317
        %v1322 = vsel %vm735, %v1317, %v1315
        %v1323 = vlaneseq
        %v1324 = vshrl.u32 %v1323, 7
        %v1325 = vsub.s32 5, %v1324
        %v1326 = vrot.slane %v1030, %v1325
        %v1327 = vlaneseq
        %v1328 = vshrl.u32 %v1327, 7
        %v1329 = vsub.s32 5, %v1328
        %v1330 = vrot.slane %v1031, %v1329
        %v1331 = vmul.f32 %v1318, %v1326
        %v1332 = vmul.f32 %v1322, %v1330
        %v1333 = vadd.f32 %v1310, %v1331
        %v1334 = vadd.f32 %v1311, %v1332
        %1337 = vrot.lane.b32.xlu0 %v1204, 113
        %v1338 = vpop.permute.xlu0 %1337
        %1339 = vrot.lane.b32.xlu0 %v1206, 113
        %v1340 = vpop.permute.xlu0 %1339
        %v1341 = vsel %vm763, %v1338, %v1340
        %v1345 = vsel %vm763, %v1340, %v1338
        %v1346 = vlaneseq
        %v1347 = vshrl.u32 %v1346, 7
        %v1348 = vsub.s32 6, %v1347
        %v1349 = vrot.slane %v1030, %v1348
        %v1350 = vlaneseq
        %v1351 = vshrl.u32 %v1350, 7
        %v1352 = vsub.s32 6, %v1351
        %v1353 = vrot.slane %v1031, %v1352
        %v1354 = vmul.f32 %v1341, %v1349
        %v1355 = vmul.f32 %v1345, %v1353
        %v1356 = vadd.f32 %v1333, %v1354
        %v1357 = vadd.f32 %v1334, %v1355
        %1360 = vrot.lane.b32.xlu0 %v1210, 112
        %v1361 = vpop.permute.xlu0 %1360
        %1362 = vrot.lane.b32.xlu0 %v1212, 112
        %v1363 = vpop.permute.xlu0 %1362
        %v1364 = vsel %vm791, %v1361, %v1363
        %v1368 = vsel %vm791, %v1363, %v1361
        %v1369 = vlaneseq
        %v1370 = vshrl.u32 %v1369, 7
        %v1371 = vsub.s32 7, %v1370
        %v1372 = vrot.slane %v1030, %v1371
        %v1373 = vlaneseq
        %v1374 = vshrl.u32 %v1373, 7
        %v1375 = vsub.s32 7, %v1374
        %v1376 = vrot.slane %v1031, %v1375
        %v1377 = vmul.f32 %v1364, %v1372
        %v1378 = vmul.f32 %v1368, %v1376
        %v1379 = vadd.f32 %v1356, %v1377
        %v1380 = vadd.f32 %v1357, %v1378
        %1383 = vrot.lane.b32.xlu0 %v1216, 111
        %v1384 = vpop.permute.xlu0 %1383
        %1385 = vrot.lane.b32.xlu0 %v1218, 111
        %v1386 = vpop.permute.xlu0 %1385
        %v1387 = vsel %vm821, %v1384, %v1386
        %v1391 = vsel %vm821, %v1386, %v1384
        %v1392 = vlaneseq
        %v1393 = vshrl.u32 %v1392, 7
        %v1394 = vsub.s32 0, %v1393
        %v1395 = vrot.slane %v1032, %v1394
        %v1396 = vlaneseq
        %v1397 = vshrl.u32 %v1396, 7
        %v1398 = vsub.s32 0, %v1397
        %v1399 = vrot.slane %v1033, %v1398
        %v1400 = vmul.f32 %v1387, %v1395
        %v1401 = vmul.f32 %v1391, %v1399
        %v1402 = vadd.f32 %v1379, %v1400
        %v1403 = vadd.f32 %v1380, %v1401
        %1405 = vset.pattern.permute.xlu0 0
        %1406 = vperm.xlu0 %1405, %v1029
        %v1407 = vpop.permute.xlu0 %1406
        %1409 = vmatprep.subr.mxu0 0.0
        %1410 = vmatpush1.msra.mxu0 %v1034
        %1411 = vmatprep.subr.mxu0 0.0
        %1412 = vmatpush1.msra.mxu0 %v1035
        %1413 = vmatprep.subr.mxu0 0.0
        %1414 = vmatpush1.msra.mxu0 %v1036
        %1415 = vmatprep.subr.mxu0 0.0
        %1416 = vmatpush1.msra.mxu0 %v1037
        %1417 = vmatprep.subr.mxu0 0.0
        %1418 = vmatpush1.msra.mxu0 %v1038
        %1419 = vmatprep.subr.mxu0 0.0
        %1420 = vmatpush1.msra.mxu0 %v1039
        %1421 = vmatprep.subr.mxu0 0.0
        %1422 = vmatpush1.msra.mxu0 %v1040
        %1423 = vmatprep.subr.mxu0 0.0
        %1424 = vmatpush1.msra.mxu0 %v1041
        %1425 = vmatprep.subr.mxu0 0.0
        %1426 = vmatpush1.msra.mxu0 %v1042
        %1427 = vmatprep.subr.mxu0 0.0
        %1428 = vmatpush1.msra.mxu0 %v1043
        %1429 = vmatprep.subr.mxu0 0.0
        %1430 = vmatpush1.msra.mxu0 %v1044
        %1431 = vmatprep.subr.mxu0 0.0
        %1432 = vmatpush1.msra.mxu0 %v1045
        %1433 = vmatprep.subr.mxu0 0.0
        %1434 = vmatpush1.msra.mxu0 %v1046
        %1435 = vmatprep.subr.mxu0 0.0
        %1436 = vmatpush1.msra.mxu0 %v1047
        %1437 = vmatprep.subr.mxu0 0.0
        %1438 = vmatpush1.msra.mxu0 %v1048
        %1439 = vmatprep.subr.mxu0 0.0
        %1440 = vmatpush1.msra.mxu0 %v1049
        %1441 = vmatprep.subr.mxu0 0.0
        %1442 = vmatpush1.msra.mxu0 %v1050
        %1443 = vmatprep.subr.mxu0 0.0
        %1444 = vmatpush1.msra.mxu0 %v1051
        %1445 = vmatprep.subr.mxu0 0.0
        %1446 = vmatpush1.msra.mxu0 %v1052
        %1447 = vmatprep.subr.mxu0 0.0
        %1448 = vmatpush1.msra.mxu0 %v1053
        %1449 = vmatprep.subr.mxu0 0.0
        %1450 = vmatpush1.msra.mxu0 %v1054
        %1451 = vmatprep.subr.mxu0 0.0
        %1452 = vmatpush1.msra.mxu0 %v1055
        %1453 = vmatprep.subr.mxu0 0.0
        %1454 = vmatpush1.msra.mxu0 %v1056
        %1455 = vmatprep.subr.mxu0 0.0
        %1456 = vmatpush1.msra.mxu0 %v1057
        %1457 = vmatprep.subr.mxu0 0.0
        %1458 = vmatpush1.msra.mxu0 %v1058
        %1459 = vmatprep.subr.mxu0 0.0
        %1460 = vmatpush1.msra.mxu0 %v1059
        %1461 = vmatprep.subr.mxu0 0.0
        %1462 = vmatpush1.msra.mxu0 %v1060
        %1463 = vmatprep.subr.mxu0 0.0
        %1464 = vmatpush1.msra.mxu0 %v1061
        %1465 = vmatprep.subr.mxu0 0.0
        %1466 = vmatpush1.msra.mxu0 %v1062
        %1467 = vmatprep.subr.mxu0 0.0
        %1468 = vmatpush1.msra.mxu0 %v1063
        %1469 = vmatprep.subr.mxu0 0.0
        %1470 = vmatpush1.msra.mxu0 %v1064
        %1471 = vmatprep.subr.mxu0 0.0
        %1472 = vmatpush1.msra.mxu0 %v1065
        %1473 = vmatprep.mubr.f32.mxu0 %v1403
        %1474 = vmatmul.mubr.f32.gmra.mrb[0].mxu0 %v1402
        %v1475 = vpop.f32.mrb[0].mxu0
        %v1476 = vadd.f32 %v1407, %v1475
        %v1477 = vpop.f32.mrb[0].mxu0
        %1478 = vdwg.mxu0
        %v1479 = vmax.f32 %v1476, 0.0
        %1481 = vset.pattern.permute.xlu0 0
        %1482 = vperm.xlu0 %1481, %v1067
        %v1483 = vpop.permute.xlu0 %1482
        %vm1485 = vcmask 64512
        %v1487 = vsel %vm1485, %v1066, 0
        %1489 = vmatprep.subr.mxu0 0.0
        %1490 = vmatpush1.msra.mxu0 %v1479
        %1491 = vmatprep.subr.mxu0 0.0
        %1492 = vmatpush1.msra.mxu0 0.0
        %1493 = vmatprep.subr.mxu0 0.0
        %1494 = vmatpush1.msra.mxu0 0.0
        %1495 = vmatprep.subr.mxu0 0.0
        %1496 = vmatpush1.msra.mxu0 0.0
        %1497 = vmatprep.subr.mxu0 0.0
        %1498 = vmatpush1.msra.mxu0 0.0
        %1499 = vmatprep.subr.mxu0 0.0
        %1500 = vmatpush1.msra.mxu0 0.0
        %1501 = vmatprep.subr.mxu0 0.0
        %1502 = vmatpush1.msra.mxu0 0.0
        %1503 = vmatprep.subr.mxu0 0.0
        %1504 = vmatpush1.msra.mxu0 0.0
        %1505 = vmatprep.subr.mxu0 0.0
        %1506 = vmatpush1.msra.mxu0 0.0
        %1507 = vmatprep.subr.mxu0 0.0
        %1508 = vmatpush1.msra.mxu0 0.0
        %1509 = vmatprep.subr.mxu0 0.0
        %1510 = vmatpush1.msra.mxu0 0.0
        %1511 = vmatprep.subr.mxu0 0.0
        %1512 = vmatpush1.msra.mxu0 0.0
        %1513 = vmatprep.subr.mxu0 0.0
        %1514 = vmatpush1.msra.mxu0 0.0
        %1515 = vmatprep.subr.mxu0 0.0
        %1516 = vmatpush1.msra.mxu0 0.0
        %1517 = vmatprep.subr.mxu0 0.0
        %1518 = vmatpush1.msra.mxu0 0.0
        %1519 = vmatprep.subr.mxu0 0.0
        %1520 = vmatpush1.msra.mxu0 0.0
        %1521 = vmatprep.subr.mxu0 0.0
        %1522 = vmatpush1.msra.mxu0 0.0
        %1523 = vmatprep.subr.mxu0 0.0
        %1524 = vmatpush1.msra.mxu0 0.0
        %1525 = vmatprep.subr.mxu0 0.0
        %1526 = vmatpush1.msra.mxu0 0.0
        %1527 = vmatprep.subr.mxu0 0.0
        %1528 = vmatpush1.msra.mxu0 0.0
        %1529 = vmatprep.subr.mxu0 0.0
        %1530 = vmatpush1.msra.mxu0 0.0
        %1531 = vmatprep.subr.mxu0 0.0
        %1532 = vmatpush1.msra.mxu0 0.0
        %1533 = vmatprep.subr.mxu0 0.0
        %1534 = vmatpush1.msra.mxu0 0.0
        %1535 = vmatprep.subr.mxu0 0.0
        %1536 = vmatpush1.msra.mxu0 0.0
        %1537 = vmatprep.subr.mxu0 0.0
        %1538 = vmatpush1.msra.mxu0 0.0
        %1539 = vmatprep.subr.mxu0 0.0
        %1540 = vmatpush1.msra.mxu0 0.0
        %1541 = vmatprep.subr.mxu0 0.0
        %1542 = vmatpush1.msra.mxu0 0.0
        %1543 = vmatprep.subr.mxu0 0.0
        %1544 = vmatpush1.msra.mxu0 0.0
        %1545 = vmatprep.subr.mxu0 0.0
        %1546 = vmatpush1.msra.mxu0 0.0
        %1547 = vmatprep.subr.mxu0 0.0
        %1548 = vmatpush1.msra.mxu0 0.0
        %1549 = vmatprep.subr.mxu0 0.0
        %1550 = vmatpush1.msra.mxu0 0.0
        %1551 = vmatprep.subr.mxu0 0.0
        %1552 = vmatpush1.msra.mxu0 0.0
        %1553 = vmatprep.mubr.f32.mxu0 0.0
        %1554 = vmatmul.mubr.f32.gmra.mrb[0].mxu0 %v1487
        %v1555 = vpop.f32.mrb[0].mxu0
        %v1556 = vadd.f32 %v1483, %v1555
        %v1557 = vpop.f32.mrb[0].mxu0
        %1558 = vdwg.mxu0
        %v1559 = vmax.f32 %v1556, 0.0
        %vm1560 = vcmask 523264
        %1561 = vst.msk [vmem:[%s506] sm:$0xff] %vm1560, %v1559
        %p1562 = scmp.lt.s32.totalorder %s28, 1
        %s1563 = scalar_select %p1562, %s28, 1
        %s1564 = smul.addr %s1563, 2
        %s1565 = smul.addr %s1564, 4
        %s1566 = scalar_lea.vmem %s13, %s1565
        %p1567 = scmp.lt.s32.totalorder %s28, 1
        %s1568 = scalar_select %p1567, %s28, 1
        %s1569 = smul.addr %s1568, 8
        %s1570 = scalar_lea.vmem %s14, %s1569
        // Predicated region
        $region81: #{_lambda_.1} parent=71 // pred_check
          %p1571 = pneg %p324
        $region82: #{_lambda_.1} parent=71 // pred_check_branch
          %1573 = sbr.rel (%p1571) target = $region84
        $region83: #{_lambda_.1} parent=71 // pred_region
          _
        $region84: #{_lambda_.1} parent=71 // pred_fallthru
          _
        // Predicated region
        $region85: #{_lambda_.1} parent=71 // pred_check
          %p1574 = pneg %p350
        $region86: #{_lambda_.1} parent=71 // pred_check_branch
          %1576 = sbr.rel (%p1574) target = $region88
        $region87: #{_lambda_.1} parent=71 // pred_region
          _
        $region88: #{_lambda_.1} parent=71 // pred_fallthru
          _
      $region72: #{_lambda_.1} parent=5 // pred_fallthru
        _
      %p1577 = scmp.le.s32.totalorder 2, %s23
      // Predicated region
      $region89: #{_lambda_.1} parent=5 // pred_check
        %p1578 = pneg %p1577
      $region90: #{_lambda_.1} parent=5 // pred_check_branch
        %1580 = sbr.rel (%p1578) target = $region92
      $region91: #{_lambda_.1} parent=5 // pred_region
        %s1581 = ssub.s32 %s23, 2
        // Predicated region
        $region93: #{_lambda_.1} parent=91 // pred_check
          %p1582 = pneg %p330
        $region94: #{_lambda_.1} parent=91 // pred_check_branch
          %1584 = sbr.rel (%p1582) target = $region96
        $region95: #{_lambda_.1} parent=91 // pred_region
          %p1585 = scmp.lt.s32.totalorder %s29, 1
          %s1586 = scalar_select %p1585, %s29, 1
          %s1587 = smul.addr %s1586, 2
          %s1588 = smul.addr %s1587, 4
          %s1589 = scalar_lea.vmem %s13, %s1588
        $region96: #{_lambda_.1} parent=91 // pred_fallthru
          _
        // Predicated region
        $region97: #{_lambda_.1} parent=91 // pred_check
          %p1590 = pneg %p356
        $region98: #{_lambda_.1} parent=91 // pred_check_branch
          %1592 = sbr.rel (%p1590) target = $region100
        $region99: #{_lambda_.1} parent=91 // pred_region
          %p1593 = scmp.lt.s32.totalorder %s29, 1
          %s1594 = scalar_select %p1593, %s29, 1
          %s1595 = smul.addr %s1594, 8
          %s1596 = scalar_lea.vmem %s14, %s1595
        $region100: #{_lambda_.1} parent=91 // pred_fallthru
          _
      $region92: #{_lambda_.1} parent=5 // pred_fallthru
        _
    $region6: #{_lambda_.1} parent=1 // loop_footer
      %s27 = sadd.s32 1, %s23
    $region7: #{_lambda_.1} parent=1 // loop_footer_branch
      %22 = sbr.rel target = $region3
    $region8: #{_lambda_.1} parent=1 // loop_exit
      _
    %1597 = vsyncpa [#allocation3], 1
    %s1598 = scalar_lea.sflag [#allocation3], 1
    %1599 = vsyncpa %s1598, 1
    %1600 = vsyncpa [#allocation5], 1

</llo_original>
